<compile_context>
chip_gen: v6e
topology: v6e:2x2x1
jax: 0.10.0
libtpu: 0.0.40
codegen_flags: <defaults>
</compile_context>

<pallas_src>
import functools

import jax
import jax.numpy as jnp
from jax import lax
from jax.experimental import pallas as pl
from jax.experimental.pallas import tpu as pltpu


# -----------------------------------------------------------------------------
# Fused kernel: all LSTM layers + LayerNorm stack + MLP head, one batch block.
# -----------------------------------------------------------------------------
def _fused_kernel(num_layers, use_layernorm, *args):
    # args = (x_ref,                                    # (T, bb, Din) time-major
    #         wih_0, whh_0, b_0, ..., wih_{L-1}, whh_{L-1}, b_{L-1},
    #         lng_ref, lnb_ref, w1_ref, b1_ref, w2_ref, b2_ref,
    #         o_ref)
    x_ref = args[0]
    lstm_refs = args[1:1 + 3 * num_layers]
    (lng_ref, lnb_ref, w1_ref, b1_ref,
     w2_ref, b2_ref) = args[1 + 3 * num_layers:7 + 3 * num_layers]
    o_ref = args[7 + 3 * num_layers]

    T, bb, d_in0 = x_ref.shape
    H = lstm_refs[1].shape[0]                    # whh_0 is (H, 4H)

    # Time-major flatten: row = t*bb + b. Leading-dim merge, layout-preserving
    # (bb is a multiple of 8, lane dim unchanged).
    rows = x_ref[...].reshape(T * bb, d_in0)

    h = jnp.zeros((bb, H), jnp.float32)
    for layer in range(num_layers):
        wih_ref = lstm_refs[3 * layer + 0]       # (D_in, 4H)
        whh_ref = lstm_refs[3 * layer + 1]       # (H, 4H)
        b_ref = lstm_refs[3 * layer + 2]         # (1, 4H)  (= b_ih + b_hh)

        # ---- hoisted input projection (no dependence on h), all T at once ----
        pre = (jnp.dot(rows, wih_ref[...],
                       preferred_element_type=jnp.float32)
               + b_ref[...])                     # (T*bb, 4H), time-major rows

        whh = whh_ref[...]
        keep_seq = layer < num_layers - 1

        # ---- recurrence: fully unrolled (toy T), h/c stay in vregs ----
        h = jnp.zeros((bb, H), jnp.float32)
        c = jnp.zeros((bb, H), jnp.float32)
        hs = []
        for t in range(T):
            gates = pre[t * bb:(t + 1) * bb, :] + jnp.dot(
                h, whh, preferred_element_type=jnp.float32)
            sg = jax.nn.sigmoid(gates)           # one EUP pass over all 4 gates
            th = jnp.tanh(gates)                 # one EUP pass over all 4 gates
            i_g = sg[:, 0:H]
            f_g = sg[:, H:2 * H]
            g_g = th[:, 2 * H:3 * H]
            o_g = sg[:, 3 * H:4 * H]
            c = f_g * c + i_g * g_g
            h = o_g * jnp.tanh(c)
            if keep_seq:
                hs.append(h)
        # inter-layer LSTM dropout(0.2) is identity in eval mode
        if keep_seq:
            rows = jnp.concatenate(hs, axis=0)   # (T*bb, H), same time-major layout

    # ---- head: stacked LayerNorms -> Linear -> ReLU -> Linear -> ReLU ----
    # LayerNorm is per-(b,t) over H, so LN(last step only) == LN(seq)[:, -1, :].
    x = h                                        # (bb, H), last step, last layer
    if use_layernorm:
        for i in range(num_layers):
            mu = jnp.mean(x, axis=-1, keepdims=True)
            var = jnp.mean((x - mu) * (x - mu), axis=-1, keepdims=True)
            x = (x - mu) * lax.rsqrt(var + 1e-5)
            x = x * lng_ref[i][None, :] + lnb_ref[i][None, :]
    y = jnp.dot(x, w1_ref[...], preferred_element_type=jnp.float32) + b1_ref[...]
    y = jnp.maximum(y, 0.0)                      # ReLU
    # nn.Dropout() -> identity in eval mode
    z = jnp.dot(y, w2_ref[...], preferred_element_type=jnp.float32) + b2_ref[...]
    o_ref[...] = jnp.maximum(z, 0.0)             # final ReLU (self.actv), lane-dense slab


# -----------------------------------------------------------------------------
# Wrapper
# -----------------------------------------------------------------------------
def sales_forecast_net(x_btd, params, use_layernorm=True, batch_block=None):
    """x_btd: (B, T, input_size), batch_first like the PyTorch module."""
    x_btd = x_btd.astype(jnp.float32)
    B, T, d_in = x_btd.shape
    L = len(params["lstm"])
    H = params["lstm"][0][1].shape[0]
    Hh = params["w1"].shape[1]
    O = params["w2"].shape[1]

    # ---- pad batch to a multiple of 8 (full sublanes everywhere) ----
    Bp = max(8, ((B + 7) // 8) * 8)
    if Bp != B:
        x_btd = jnp.pad(x_btd, ((0, Bp - B), (0, 0), (0, 0)))

    # ---- time-major input: (T, Bp, Din). One-off layout plumbing in XLA. ----
    x_tbd = jnp.transpose(x_btd, (1, 0, 2))

    # ---- grid policy: 1 block on single-TC chips; exactly 2 on v7x if B>=16 ----
    if batch_block is None:
        batch_block = Bp
        try:
            kind = jax.devices()[0].device_kind.lower()
            if "v7" in kind and Bp >= 16 and (Bp // 2) % 8 == 0:
                batch_block = Bp // 2
        except Exception:
            pass
    assert Bp % batch_block == 0 and batch_block % 8 == 0
    bb = batch_block
    n_blocks = Bp // bb

    # ---- lane-dense output head: pad w2/b2 columns to 128 with zeros ----
    O_pad = 128
    w2p = jnp.zeros((Hh, O_pad), jnp.float32).at[:, :O].set(params["w2"])
    b2p = jnp.zeros((1, O_pad), jnp.float32).at[:, :O].set(params["b2"])

    def full(shape):
        return pl.BlockSpec(shape, lambda i: (0,) * len(shape))

    in_specs = [pl.BlockSpec((T, bb, d_in), lambda i: (0, i, 0))]
    args = [x_tbd]
    for (w_ih, w_hh, b) in params["lstm"]:
        in_specs += [full(w_ih.shape), full(w_hh.shape), full(b.shape)]
        args += [w_ih, w_hh, b]
    in_specs += [full((L, H)), full((L, H)),
                 full((H, Hh)), full((1, Hh)),
                 full((Hh, O_pad)), full((1, O_pad))]
    args += [params["ln_gamma"], params["ln_beta"],
             params["w1"], params["b1"], w2p, b2p]

    out = pl.pallas_call(
        functools.partial(_fused_kernel, L, use_layernorm),
        out_shape=jax.ShapeDtypeStruct((Bp, O_pad), jnp.float32),
        grid=(n_blocks,),
        in_specs=in_specs,
        out_specs=pl.BlockSpec((bb, O_pad), lambda i: (i, 0)),
        compiler_params=pltpu.CompilerParams(
            dimension_semantics=("parallel",)),   # batch blocks are independent
    )(*args)
    return out[:B, 0]                             # drop batch padding + .squeeze(1)


# -----------------------------------------------------------------------------
# Parameter init (deterministic, PyTorch-style uniform bounds)
# -----------------------------------------------------------------------------
def init_params(key, input_size, hidden_size, num_layers, output_size):
    params = {"lstm": []}
    k = 1.0 / jnp.sqrt(hidden_size)
    for layer in range(num_layers):
        d_in = input_size if layer == 0 else hidden_size
        key, k1, k2, k3, k4 = jax.random.split(key, 5)
        w_ih = jax.random.uniform(k1, (d_in, 4 * hidden_size), jnp.float32, -k, k)
        w_hh = jax.random.uniform(k2, (hidden_size, 4 * hidden_size), jnp.float32, -k, k)
        b_ih = jax.random.uniform(k3, (4 * hidden_size,), jnp.float32, -k, k)
        b_hh = jax.random.uniform(k4, (4 * hidden_size,), jnp.float32, -k, k)
        params["lstm"].append((w_ih, w_hh, (b_ih + b_hh)[None, :]))

    params["ln_gamma"] = jnp.ones((num_layers, hidden_size), jnp.float32)
    params["ln_beta"] = jnp.zeros((num_layers, hidden_size), jnp.float32)

    hh = hidden_size // 2
    key, k1, k2, k3, k4 = jax.random.split(key, 5)
    k_fc1 = 1.0 / jnp.sqrt(hidden_size)
    k_fc2 = 1.0 / jnp.sqrt(hh)
    params["w1"] = jax.random.uniform(k1, (hidden_size, hh), jnp.float32, -k_fc1, k_fc1)
    params["b1"] = jax.random.uniform(k2, (1, hh), jnp.float32, -k_fc1, k_fc1)
    params["w2"] = jax.random.uniform(k3, (hh, output_size), jnp.float32, -k_fc2, k_fc2)
    params["b2"] = jax.random.uniform(k4, (1, output_size), jnp.float32, -k_fc2, k_fc2)
    return params


# -----------------------------------------------------------------------------
# Pure-JAX reference of the PyTorch forward (eval mode), for verification.
# -----------------------------------------------------------------------------
def _reference_forward(x, params, use_layernorm):
    out = x.astype(jnp.float32)
    for (w_ih, w_hh, b) in params["lstm"]:
        B, T, _ = out.shape
        H = w_hh.shape[0]
        h = jnp.zeros((B, H), jnp.float32)
        c = jnp.zeros((B, H), jnp.float32)
        ys = []
        for t in range(T):
            g = out[:, t, :] @ w_ih + h @ w_hh + b
            i = jax.nn.sigmoid(g[:, :H])
            f = jax.nn.sigmoid(g[:, H:2 * H])
            gg = jnp.tanh(g[:, 2 * H:3 * H])
            o = jax.nn.sigmoid(g[:, 3 * H:])
            c = f * c + i * gg
            h = o * jnp.tanh(c)
            ys.append(h)
        out = jnp.stack(ys, axis=1)
    z = out[:, -1, :]
    if use_layernorm:
        for i in range(len(params["lstm"])):
            mu = z.mean(-1, keepdims=True)
            var = ((z - mu) ** 2).mean(-1, keepdims=True)
            z = (z - mu) / jnp.sqrt(var + 1e-5)
            z = z * params["ln_gamma"][i] + params["ln_beta"][i]
    y = jnp.maximum(z @ params["w1"] + params["b1"], 0.0)
    y = jnp.maximum(y @ params["w2"] + params["b2"], 0.0)
    return y[:, 0]


if __name__ == "__main__":
    INPUT_SIZE = 8
    HIDDEN_SIZE = 32
    NUM_LAYERS = 2
    OUTPUT_SIZE = 1
    USE_LAYERNORM = True
    BATCH = 4          # exercises the pad-to-8 path
    SEQ = 8

    key = jax.random.PRNGKey(0)
    key, kx, kp = jax.random.split(key, 3)
    x = jax.random.normal(kx, (BATCH, SEQ, INPUT_SIZE), jnp.float32)
    params = init_params(kp, INPUT_SIZE, HIDDEN_SIZE, NUM_LAYERS, OUTPUT_SIZE)

    out = sales_forecast_net(x, params, use_layernorm=USE_LAYERNORM)
    out = jax.block_until_ready(out)
    assert out.shape == (BATCH,), out.shape

    ref = jax.block_until_ready(_reference_forward(x, params, USE_LAYERNORM))
    assert bool(jnp.all(jnp.isfinite(out)))
    assert bool(jnp.allclose(out, ref, rtol=1e-3, atol=1e-3)), (out, ref)

    print("KERNEL_OK")
</pallas_src>

<mosaic_0001>
module attributes {stable_mosaic.version = 11 : i64} {
  func.func @_fused_kernel(%arg0: i32, %arg1: memref<8x8x8xf32, #tpu.memory_space<vmem>>, %arg2: memref<8x128xf32, #tpu.memory_space<vmem>>, %arg3: memref<32x128xf32, #tpu.memory_space<vmem>>, %arg4: memref<1x128xf32, #tpu.memory_space<vmem>>, %arg5: memref<32x128xf32, #tpu.memory_space<vmem>>, %arg6: memref<32x128xf32, #tpu.memory_space<vmem>>, %arg7: memref<1x128xf32, #tpu.memory_space<vmem>>, %arg8: memref<2x32xf32, #tpu.memory_space<vmem>>, %arg9: memref<2x32xf32, #tpu.memory_space<vmem>>, %arg10: memref<32x16xf32, #tpu.memory_space<vmem>>, %arg11: memref<1x16xf32, #tpu.memory_space<vmem>>, %arg12: memref<16x128xf32, #tpu.memory_space<vmem>>, %arg13: memref<1x128xf32, #tpu.memory_space<vmem>>, %arg14: memref<8x128xf32, #tpu.memory_space<vmem>>) attributes {dimension_semantics = [#tpu.dimension_semantics<parallel>], iteration_bounds = array<i64: 1>, scalar_prefetch = 0 : i64, scratch_operands = 0 : i64, tpu.core_type = #tpu.core_type<tc>, window_params = [{transform_indices = @transform_0, window_bounds = array<i64: 8, 8, 8>}, {pipeline_mode = #tpu.pipeline_mode<synchronous>, transform_indices = @transform_1, window_bounds = array<i64: 8, 128>}, {pipeline_mode = #tpu.pipeline_mode<synchronous>, transform_indices = @transform_2, window_bounds = array<i64: 32, 128>}, {pipeline_mode = #tpu.pipeline_mode<synchronous>, transform_indices = @transform_3, window_bounds = array<i64: 1, 128>}, {pipeline_mode = #tpu.pipeline_mode<synchronous>, transform_indices = @transform_4, window_bounds = array<i64: 32, 128>}, {pipeline_mode = #tpu.pipeline_mode<synchronous>, transform_indices = @transform_5, window_bounds = array<i64: 32, 128>}, {pipeline_mode = #tpu.pipeline_mode<synchronous>, transform_indices = @transform_6, window_bounds = array<i64: 1, 128>}, {pipeline_mode = #tpu.pipeline_mode<synchronous>, transform_indices = @transform_7, window_bounds = array<i64: 2, 32>}, {pipeline_mode = #tpu.pipeline_mode<synchronous>, transform_indices = @transform_8, window_bounds = array<i64: 2, 32>}, {pipeline_mode = #tpu.pipeline_mode<synchronous>, transform_indices = @transform_9, window_bounds = array<i64: 32, 16>}, {pipeline_mode = #tpu.pipeline_mode<synchronous>, transform_indices = @transform_10, window_bounds = array<i64: 1, 16>}, {pipeline_mode = #tpu.pipeline_mode<synchronous>, transform_indices = @transform_11, window_bounds = array<i64: 16, 128>}, {pipeline_mode = #tpu.pipeline_mode<synchronous>, transform_indices = @transform_12, window_bounds = array<i64: 1, 128>}, {transform_indices = @transform_13, window_bounds = array<i64: 8, 128>}]} {
    %c0 = arith.constant 0 : index
    %c0_0 = arith.constant 0 : index
    %c0_1 = arith.constant 0 : index
    %0 = vector.load %arg1[%c0, %c0_0, %c0_1] : memref<8x8x8xf32, #tpu.memory_space<vmem>>, vector<8x8x8xf32>
    %1 = vector.shape_cast %0 : vector<8x8x8xf32> to vector<64x8xf32>
    %c0_2 = arith.constant 0 : index
    %c0_3 = arith.constant 0 : index
    %2 = vector.load %arg2[%c0_2, %c0_3] : memref<8x128xf32, #tpu.memory_space<vmem>>, vector<8x128xf32>
    %cst = arith.constant dense<0.000000e+00> : vector<64x128xf32>
    %3 = tpu.matmul %1, %2, %cst {dimension_numbers = #tpu.dot_dimension_numbers<[1], [0], [0], [1], [0, 0, 1, 1], [], []>} : vector<64x8xf32>, vector<8x128xf32>, vector<64x128xf32> -> vector<64x128xf32>
    %c0_4 = arith.constant 0 : index
    %c0_5 = arith.constant 0 : index
    %4 = vector.load %arg4[%c0_4, %c0_5] : memref<1x128xf32, #tpu.memory_space<vmem>>, vector<1x128xf32>
    %5 = vector.broadcast %4 : vector<1x128xf32> to vector<64x128xf32>
    %6 = arith.addf %3, %5 : vector<64x128xf32>
    %c0_6 = arith.constant 0 : index
    %c0_7 = arith.constant 0 : index
    %7 = vector.load %arg3[%c0_6, %c0_7] : memref<32x128xf32, #tpu.memory_space<vmem>>, vector<32x128xf32>
    %cst_8 = arith.constant 0.000000e+00 : f32
    %8 = vector.broadcast %cst_8 : f32 to vector<8x32xf32>
    %cst_9 = arith.constant 0.000000e+00 : f32
    %9 = vector.broadcast %cst_9 : f32 to vector<8x32xf32>
    %10 = vector.extract_strided_slice %6 {offsets = [0, 0], sizes = [8, 128], strides = [1, 1]} : vector<64x128xf32> to vector<8x128xf32>
    %cst_10 = arith.constant dense<0.000000e+00> : vector<8x128xf32>
    %11 = tpu.matmul %8, %7, %cst_10 {dimension_numbers = #tpu.dot_dimension_numbers<[1], [0], [0], [1], [0, 0, 1, 1], [], []>} : vector<8x32xf32>, vector<32x128xf32>, vector<8x128xf32> -> vector<8x128xf32>
    %12 = arith.addf %10, %11 : vector<8x128xf32>
    %13 = arith.negf %12 : vector<8x128xf32>
    %14 = math.exp %13 : vector<8x128xf32>
    %cst_11 = arith.constant 1.000000e+00 : f32
    %15 = vector.broadcast %cst_11 : f32 to vector<8x128xf32>
    %16 = arith.addf %15, %14 : vector<8x128xf32>
    %17 = arith.divf %15, %16 : vector<8x128xf32>
    %18 = math.tanh %12 : vector<8x128xf32>
    %19 = vector.extract_strided_slice %17 {offsets = [0, 0], sizes = [8, 32], strides = [1, 1]} : vector<8x128xf32> to vector<8x32xf32>
    %20 = vector.extract_strided_slice %17 {offsets = [0, 32], sizes = [8, 32], strides = [1, 1]} : vector<8x128xf32> to vector<8x32xf32>
    %21 = vector.extract_strided_slice %18 {offsets = [0, 64], sizes = [8, 32], strides = [1, 1]} : vector<8x128xf32> to vector<8x32xf32>
    %22 = vector.extract_strided_slice %17 {offsets = [0, 96], sizes = [8, 32], strides = [1, 1]} : vector<8x128xf32> to vector<8x32xf32>
    %23 = arith.mulf %20, %9 : vector<8x32xf32>
    %24 = arith.mulf %19, %21 : vector<8x32xf32>
    %25 = arith.addf %23, %24 : vector<8x32xf32>
    %26 = math.tanh %25 : vector<8x32xf32>
    %27 = arith.mulf %22, %26 : vector<8x32xf32>
    %28 = vector.extract_strided_slice %6 {offsets = [8, 0], sizes = [8, 128], strides = [1, 1]} : vector<64x128xf32> to vector<8x128xf32>
    %cst_12 = arith.constant dense<0.000000e+00> : vector<8x128xf32>
    %29 = tpu.matmul %27, %7, %cst_12 {dimension_numbers = #tpu.dot_dimension_numbers<[1], [0], [0], [1], [0, 0, 1, 1], [], []>} : vector<8x32xf32>, vector<32x128xf32>, vector<8x128xf32> -> vector<8x128xf32>
    %30 = arith.addf %28, %29 : vector<8x128xf32>
    %31 = arith.negf %30 : vector<8x128xf32>
    %32 = math.exp %31 : vector<8x128xf32>
    %cst_13 = arith.constant 1.000000e+00 : f32
    %33 = vector.broadcast %cst_13 : f32 to vector<8x128xf32>
    %34 = arith.addf %33, %32 : vector<8x128xf32>
    %35 = arith.divf %33, %34 : vector<8x128xf32>
    %36 = math.tanh %30 : vector<8x128xf32>
    %37 = vector.extract_strided_slice %35 {offsets = [0, 0], sizes = [8, 32], strides = [1, 1]} : vector<8x128xf32> to vector<8x32xf32>
    %38 = vector.extract_strided_slice %35 {offsets = [0, 32], sizes = [8, 32], strides = [1, 1]} : vector<8x128xf32> to vector<8x32xf32>
    %39 = vector.extract_strided_slice %36 {offsets = [0, 64], sizes = [8, 32], strides = [1, 1]} : vector<8x128xf32> to vector<8x32xf32>
    %40 = vector.extract_strided_slice %35 {offsets = [0, 96], sizes = [8, 32], strides = [1, 1]} : vector<8x128xf32> to vector<8x32xf32>
    %41 = arith.mulf %38, %25 : vector<8x32xf32>
    %42 = arith.mulf %37, %39 : vector<8x32xf32>
    %43 = arith.addf %41, %42 : vector<8x32xf32>
    %44 = math.tanh %43 : vector<8x32xf32>
    %45 = arith.mulf %40, %44 : vector<8x32xf32>
    %46 = vector.extract_strided_slice %6 {offsets = [16, 0], sizes = [8, 128], strides = [1, 1]} : vector<64x128xf32> to vector<8x128xf32>
    %cst_14 = arith.constant dense<0.000000e+00> : vector<8x128xf32>
    %47 = tpu.matmul %45, %7, %cst_14 {dimension_numbers = #tpu.dot_dimension_numbers<[1], [0], [0], [1], [0, 0, 1, 1], [], []>} : vector<8x32xf32>, vector<32x128xf32>, vector<8x128xf32> -> vector<8x128xf32>
    %48 = arith.addf %46, %47 : vector<8x128xf32>
    %49 = arith.negf %48 : vector<8x128xf32>
    %50 = math.exp %49 : vector<8x128xf32>
    %cst_15 = arith.constant 1.000000e+00 : f32
    %51 = vector.broadcast %cst_15 : f32 to vector<8x128xf32>
    %52 = arith.addf %51, %50 : vector<8x128xf32>
    %53 = arith.divf %51, %52 : vector<8x128xf32>
    %54 = math.tanh %48 : vector<8x128xf32>
    %55 = vector.extract_strided_slice %53 {offsets = [0, 0], sizes = [8, 32], strides = [1, 1]} : vector<8x128xf32> to vector<8x32xf32>
    %56 = vector.extract_strided_slice %53 {offsets = [0, 32], sizes = [8, 32], strides = [1, 1]} : vector<8x128xf32> to vector<8x32xf32>
    %57 = vector.extract_strided_slice %54 {offsets = [0, 64], sizes = [8, 32], strides = [1, 1]} : vector<8x128xf32> to vector<8x32xf32>
    %58 = vector.extract_strided_slice %53 {offsets = [0, 96], sizes = [8, 32], strides = [1, 1]} : vector<8x128xf32> to vector<8x32xf32>
    %59 = arith.mulf %56, %43 : vector<8x32xf32>
    %60 = arith.mulf %55, %57 : vector<8x32xf32>
    %61 = arith.addf %59, %60 : vector<8x32xf32>
    %62 = math.tanh %61 : vector<8x32xf32>
    %63 = arith.mulf %58, %62 : vector<8x32xf32>
    %64 = vector.extract_strided_slice %6 {offsets = [24, 0], sizes = [8, 128], strides = [1, 1]} : vector<64x128xf32> to vector<8x128xf32>
    %cst_16 = arith.constant dense<0.000000e+00> : vector<8x128xf32>
    %65 = tpu.matmul %63, %7, %cst_16 {dimension_numbers = #tpu.dot_dimension_numbers<[1], [0], [0], [1], [0, 0, 1, 1], [], []>} : vector<8x32xf32>, vector<32x128xf32>, vector<8x128xf32> -> vector<8x128xf32>
    %66 = arith.addf %64, %65 : vector<8x128xf32>
    %67 = arith.negf %66 : vector<8x128xf32>
    %68 = math.exp %67 : vector<8x128xf32>
    %cst_17 = arith.constant 1.000000e+00 : f32
    %69 = vector.broadcast %cst_17 : f32 to vector<8x128xf32>
    %70 = arith.addf %69, %68 : vector<8x128xf32>
    %71 = arith.divf %69, %70 : vector<8x128xf32>
    %72 = math.tanh %66 : vector<8x128xf32>
    %73 = vector.extract_strided_slice %71 {offsets = [0, 0], sizes = [8, 32], strides = [1, 1]} : vector<8x128xf32> to vector<8x32xf32>
    %74 = vector.extract_strided_slice %71 {offsets = [0, 32], sizes = [8, 32], strides = [1, 1]} : vector<8x128xf32> to vector<8x32xf32>
    %75 = vector.extract_strided_slice %72 {offsets = [0, 64], sizes = [8, 32], strides = [1, 1]} : vector<8x128xf32> to vector<8x32xf32>
    %76 = vector.extract_strided_slice %71 {offsets = [0, 96], sizes = [8, 32], strides = [1, 1]} : vector<8x128xf32> to vector<8x32xf32>
    %77 = arith.mulf %74, %61 : vector<8x32xf32>
    %78 = arith.mulf %73, %75 : vector<8x32xf32>
    %79 = arith.addf %77, %78 : vector<8x32xf32>
    %80 = math.tanh %79 : vector<8x32xf32>
    %81 = arith.mulf %76, %80 : vector<8x32xf32>
    %82 = vector.extract_strided_slice %6 {offsets = [32, 0], sizes = [8, 128], strides = [1, 1]} : vector<64x128xf32> to vector<8x128xf32>
    %cst_18 = arith.constant dense<0.000000e+00> : vector<8x128xf32>
    %83 = tpu.matmul %81, %7, %cst_18 {dimension_numbers = #tpu.dot_dimension_numbers<[1], [0], [0], [1], [0, 0, 1, 1], [], []>} : vector<8x32xf32>, vector<32x128xf32>, vector<8x128xf32> -> vector<8x128xf32>
    %84 = arith.addf %82, %83 : vector<8x128xf32>
    %85 = arith.negf %84 : vector<8x128xf32>
    %86 = math.exp %85 : vector<8x128xf32>
    %cst_19 = arith.constant 1.000000e+00 : f32
    %87 = vector.broadcast %cst_19 : f32 to vector<8x128xf32>
    %88 = arith.addf %87, %86 : vector<8x128xf32>
    %89 = arith.divf %87, %88 : vector<8x128xf32>
    %90 = math.tanh %84 : vector<8x128xf32>
    %91 = vector.extract_strided_slice %89 {offsets = [0, 0], sizes = [8, 32], strides = [1, 1]} : vector<8x128xf32> to vector<8x32xf32>
    %92 = vector.extract_strided_slice %89 {offsets = [0, 32], sizes = [8, 32], strides = [1, 1]} : vector<8x128xf32> to vector<8x32xf32>
    %93 = vector.extract_strided_slice %90 {offsets = [0, 64], sizes = [8, 32], strides = [1, 1]} : vector<8x128xf32> to vector<8x32xf32>
    %94 = vector.extract_strided_slice %89 {offsets = [0, 96], sizes = [8, 32], strides = [1, 1]} : vector<8x128xf32> to vector<8x32xf32>
    %95 = arith.mulf %92, %79 : vector<8x32xf32>
    %96 = arith.mulf %91, %93 : vector<8x32xf32>
    %97 = arith.addf %95, %96 : vector<8x32xf32>
    %98 = math.tanh %97 : vector<8x32xf32>
    %99 = arith.mulf %94, %98 : vector<8x32xf32>
    %100 = vector.extract_strided_slice %6 {offsets = [40, 0], sizes = [8, 128], strides = [1, 1]} : vector<64x128xf32> to vector<8x128xf32>
    %cst_20 = arith.constant dense<0.000000e+00> : vector<8x128xf32>
    %101 = tpu.matmul %99, %7, %cst_20 {dimension_numbers = #tpu.dot_dimension_numbers<[1], [0], [0], [1], [0, 0, 1, 1], [], []>} : vector<8x32xf32>, vector<32x128xf32>, vector<8x128xf32> -> vector<8x128xf32>
    %102 = arith.addf %100, %101 : vector<8x128xf32>
    %103 = arith.negf %102 : vector<8x128xf32>
    %104 = math.exp %103 : vector<8x128xf32>
    %cst_21 = arith.constant 1.000000e+00 : f32
    %105 = vector.broadcast %cst_21 : f32 to vector<8x128xf32>
    %106 = arith.addf %105, %104 : vector<8x128xf32>
    %107 = arith.divf %105, %106 : vector<8x128xf32>
    %108 = math.tanh %102 : vector<8x128xf32>
    %109 = vector.extract_strided_slice %107 {offsets = [0, 0], sizes = [8, 32], strides = [1, 1]} : vector<8x128xf32> to vector<8x32xf32>
    %110 = vector.extract_strided_slice %107 {offsets = [0, 32], sizes = [8, 32], strides = [1, 1]} : vector<8x128xf32> to vector<8x32xf32>
    %111 = vector.extract_strided_slice %108 {offsets = [0, 64], sizes = [8, 32], strides = [1, 1]} : vector<8x128xf32> to vector<8x32xf32>
    %112 = vector.extract_strided_slice %107 {offsets = [0, 96], sizes = [8, 32], strides = [1, 1]} : vector<8x128xf32> to vector<8x32xf32>
    %113 = arith.mulf %110, %97 : vector<8x32xf32>
    %114 = arith.mulf %109, %111 : vector<8x32xf32>
    %115 = arith.addf %113, %114 : vector<8x32xf32>
    %116 = math.tanh %115 : vector<8x32xf32>
    %117 = arith.mulf %112, %116 : vector<8x32xf32>
    %118 = vector.extract_strided_slice %6 {offsets = [48, 0], sizes = [8, 128], strides = [1, 1]} : vector<64x128xf32> to vector<8x128xf32>
    %cst_22 = arith.constant dense<0.000000e+00> : vector<8x128xf32>
    %119 = tpu.matmul %117, %7, %cst_22 {dimension_numbers = #tpu.dot_dimension_numbers<[1], [0], [0], [1], [0, 0, 1, 1], [], []>} : vector<8x32xf32>, vector<32x128xf32>, vector<8x128xf32> -> vector<8x128xf32>
    %120 = arith.addf %118, %119 : vector<8x128xf32>
    %121 = arith.negf %120 : vector<8x128xf32>
    %122 = math.exp %121 : vector<8x128xf32>
    %cst_23 = arith.constant 1.000000e+00 : f32
    %123 = vector.broadcast %cst_23 : f32 to vector<8x128xf32>
    %124 = arith.addf %123, %122 : vector<8x128xf32>
    %125 = arith.divf %123, %124 : vector<8x128xf32>
    %126 = math.tanh %120 : vector<8x128xf32>
    %127 = vector.extract_strided_slice %125 {offsets = [0, 0], sizes = [8, 32], strides = [1, 1]} : vector<8x128xf32> to vector<8x32xf32>
    %128 = vector.extract_strided_slice %125 {offsets = [0, 32], sizes = [8, 32], strides = [1, 1]} : vector<8x128xf32> to vector<8x32xf32>
    %129 = vector.extract_strided_slice %126 {offsets = [0, 64], sizes = [8, 32], strides = [1, 1]} : vector<8x128xf32> to vector<8x32xf32>
    %130 = vector.extract_strided_slice %125 {offsets = [0, 96], sizes = [8, 32], strides = [1, 1]} : vector<8x128xf32> to vector<8x32xf32>
    %131 = arith.mulf %128, %115 : vector<8x32xf32>
    %132 = arith.mulf %127, %129 : vector<8x32xf32>
    %133 = arith.addf %131, %132 : vector<8x32xf32>
    %134 = math.tanh %133 : vector<8x32xf32>
    %135 = arith.mulf %130, %134 : vector<8x32xf32>
    %136 = vector.extract_strided_slice %6 {offsets = [56, 0], sizes = [8, 128], strides = [1, 1]} : vector<64x128xf32> to vector<8x128xf32>
    %cst_24 = arith.constant dense<0.000000e+00> : vector<8x128xf32>
    %137 = tpu.matmul %135, %7, %cst_24 {dimension_numbers = #tpu.dot_dimension_numbers<[1], [0], [0], [1], [0, 0, 1, 1], [], []>} : vector<8x32xf32>, vector<32x128xf32>, vector<8x128xf32> -> vector<8x128xf32>
    %138 = arith.addf %136, %137 : vector<8x128xf32>
    %139 = arith.negf %138 : vector<8x128xf32>
    %140 = math.exp %139 : vector<8x128xf32>
    %cst_25 = arith.constant 1.000000e+00 : f32
    %141 = vector.broadcast %cst_25 : f32 to vector<8x128xf32>
    %142 = arith.addf %141, %140 : vector<8x128xf32>
    %143 = arith.divf %141, %142 : vector<8x128xf32>
    %144 = math.tanh %138 : vector<8x128xf32>
    %145 = vector.extract_strided_slice %143 {offsets = [0, 0], sizes = [8, 32], strides = [1, 1]} : vector<8x128xf32> to vector<8x32xf32>
    %146 = vector.extract_strided_slice %143 {offsets = [0, 32], sizes = [8, 32], strides = [1, 1]} : vector<8x128xf32> to vector<8x32xf32>
    %147 = vector.extract_strided_slice %144 {offsets = [0, 64], sizes = [8, 32], strides = [1, 1]} : vector<8x128xf32> to vector<8x32xf32>
    %148 = vector.extract_strided_slice %143 {offsets = [0, 96], sizes = [8, 32], strides = [1, 1]} : vector<8x128xf32> to vector<8x32xf32>
    %149 = arith.mulf %146, %133 : vector<8x32xf32>
    %150 = arith.mulf %145, %147 : vector<8x32xf32>
    %151 = arith.addf %149, %150 : vector<8x32xf32>
    %152 = math.tanh %151 : vector<8x32xf32>
    %153 = arith.mulf %148, %152 : vector<8x32xf32>
    %154 = tpu.concatenate %27, %45, %63, %81, %99, %117, %135, %153 in 0 : vector<8x32xf32>, vector<8x32xf32>, vector<8x32xf32>, vector<8x32xf32>, vector<8x32xf32>, vector<8x32xf32>, vector<8x32xf32>, vector<8x32xf32> -> vector<64x32xf32>
    %c0_26 = arith.constant 0 : index
    %c0_27 = arith.constant 0 : index
    %155 = vector.load %arg5[%c0_26, %c0_27] : memref<32x128xf32, #tpu.memory_space<vmem>>, vector<32x128xf32>
    %cst_28 = arith.constant dense<0.000000e+00> : vector<64x128xf32>
    %156 = tpu.matmul %154, %155, %cst_28 {dimension_numbers = #tpu.dot_dimension_numbers<[1], [0], [0], [1], [0, 0, 1, 1], [], []>} : vector<64x32xf32>, vector<32x128xf32>, vector<64x128xf32> -> vector<64x128xf32>
    %c0_29 = arith.constant 0 : index
    %c0_30 = arith.constant 0 : index
    %157 = vector.load %arg7[%c0_29, %c0_30] : memref<1x128xf32, #tpu.memory_space<vmem>>, vector<1x128xf32>
    %158 = vector.broadcast %157 : vector<1x128xf32> to vector<64x128xf32>
    %159 = arith.addf %156, %158 : vector<64x128xf32>
    %c0_31 = arith.constant 0 : index
    %c0_32 = arith.constant 0 : index
    %160 = vector.load %arg6[%c0_31, %c0_32] : memref<32x128xf32, #tpu.memory_space<vmem>>, vector<32x128xf32>
    %cst_33 = arith.constant 0.000000e+00 : f32
    %161 = vector.broadcast %cst_33 : f32 to vector<8x32xf32>
    %cst_34 = arith.constant 0.000000e+00 : f32
    %162 = vector.broadcast %cst_34 : f32 to vector<8x32xf32>
    %163 = vector.extract_strided_slice %159 {offsets = [0, 0], sizes = [8, 128], strides = [1, 1]} : vector<64x128xf32> to vector<8x128xf32>
    %cst_35 = arith.constant dense<0.000000e+00> : vector<8x128xf32>
    %164 = tpu.matmul %161, %160, %cst_35 {dimension_numbers = #tpu.dot_dimension_numbers<[1], [0], [0], [1], [0, 0, 1, 1], [], []>} : vector<8x32xf32>, vector<32x128xf32>, vector<8x128xf32> -> vector<8x128xf32>
    %165 = arith.addf %163, %164 : vector<8x128xf32>
    %166 = arith.negf %165 : vector<8x128xf32>
    %167 = math.exp %166 : vector<8x128xf32>
    %cst_36 = arith.constant 1.000000e+00 : f32
    %168 = vector.broadcast %cst_36 : f32 to vector<8x128xf32>
    %169 = arith.addf %168, %167 : vector<8x128xf32>
    %170 = arith.divf %168, %169 : vector<8x128xf32>
    %171 = math.tanh %165 : vector<8x128xf32>
    %172 = vector.extract_strided_slice %170 {offsets = [0, 0], sizes = [8, 32], strides = [1, 1]} : vector<8x128xf32> to vector<8x32xf32>
    %173 = vector.extract_strided_slice %170 {offsets = [0, 32], sizes = [8, 32], strides = [1, 1]} : vector<8x128xf32> to vector<8x32xf32>
    %174 = vector.extract_strided_slice %171 {offsets = [0, 64], sizes = [8, 32], strides = [1, 1]} : vector<8x128xf32> to vector<8x32xf32>
    %175 = vector.extract_strided_slice %170 {offsets = [0, 96], sizes = [8, 32], strides = [1, 1]} : vector<8x128xf32> to vector<8x32xf32>
    %176 = arith.mulf %173, %162 : vector<8x32xf32>
    %177 = arith.mulf %172, %174 : vector<8x32xf32>
    %178 = arith.addf %176, %177 : vector<8x32xf32>
    %179 = math.tanh %178 : vector<8x32xf32>
    %180 = arith.mulf %175, %179 : vector<8x32xf32>
    %181 = vector.extract_strided_slice %159 {offsets = [8, 0], sizes = [8, 128], strides = [1, 1]} : vector<64x128xf32> to vector<8x128xf32>
    %cst_37 = arith.constant dense<0.000000e+00> : vector<8x128xf32>
    %182 = tpu.matmul %180, %160, %cst_37 {dimension_numbers = #tpu.dot_dimension_numbers<[1], [0], [0], [1], [0, 0, 1, 1], [], []>} : vector<8x32xf32>, vector<32x128xf32>, vector<8x128xf32> -> vector<8x128xf32>
    %183 = arith.addf %181, %182 : vector<8x128xf32>
    %184 = arith.negf %183 : vector<8x128xf32>
    %185 = math.exp %184 : vector<8x128xf32>
    %cst_38 = arith.constant 1.000000e+00 : f32
    %186 = vector.broadcast %cst_38 : f32 to vector<8x128xf32>
    %187 = arith.addf %186, %185 : vector<8x128xf32>
    %188 = arith.divf %186, %187 : vector<8x128xf32>
    %189 = math.tanh %183 : vector<8x128xf32>
    %190 = vector.extract_strided_slice %188 {offsets = [0, 0], sizes = [8, 32], strides = [1, 1]} : vector<8x128xf32> to vector<8x32xf32>
    %191 = vector.extract_strided_slice %188 {offsets = [0, 32], sizes = [8, 32], strides = [1, 1]} : vector<8x128xf32> to vector<8x32xf32>
    %192 = vector.extract_strided_slice %189 {offsets = [0, 64], sizes = [8, 32], strides = [1, 1]} : vector<8x128xf32> to vector<8x32xf32>
    %193 = vector.extract_strided_slice %188 {offsets = [0, 96], sizes = [8, 32], strides = [1, 1]} : vector<8x128xf32> to vector<8x32xf32>
    %194 = arith.mulf %191, %178 : vector<8x32xf32>
    %195 = arith.mulf %190, %192 : vector<8x32xf32>
    %196 = arith.addf %194, %195 : vector<8x32xf32>
    %197 = math.tanh %196 : vector<8x32xf32>
    %198 = arith.mulf %193, %197 : vector<8x32xf32>
    %199 = vector.extract_strided_slice %159 {offsets = [16, 0], sizes = [8, 128], strides = [1, 1]} : vector<64x128xf32> to vector<8x128xf32>
    %cst_39 = arith.constant dense<0.000000e+00> : vector<8x128xf32>
    %200 = tpu.matmul %198, %160, %cst_39 {dimension_numbers = #tpu.dot_dimension_numbers<[1], [0], [0], [1], [0, 0, 1, 1], [], []>} : vector<8x32xf32>, vector<32x128xf32>, vector<8x128xf32> -> vector<8x128xf32>
    %201 = arith.addf %199, %200 : vector<8x128xf32>
    %202 = arith.negf %201 : vector<8x128xf32>
    %203 = math.exp %202 : vector<8x128xf32>
    %cst_40 = arith.constant 1.000000e+00 : f32
    %204 = vector.broadcast %cst_40 : f32 to vector<8x128xf32>
    %205 = arith.addf %204, %203 : vector<8x128xf32>
    %206 = arith.divf %204, %205 : vector<8x128xf32>
    %207 = math.tanh %201 : vector<8x128xf32>
    %208 = vector.extract_strided_slice %206 {offsets = [0, 0], sizes = [8, 32], strides = [1, 1]} : vector<8x128xf32> to vector<8x32xf32>
    %209 = vector.extract_strided_slice %206 {offsets = [0, 32], sizes = [8, 32], strides = [1, 1]} : vector<8x128xf32> to vector<8x32xf32>
    %210 = vector.extract_strided_slice %207 {offsets = [0, 64], sizes = [8, 32], strides = [1, 1]} : vector<8x128xf32> to vector<8x32xf32>
    %211 = vector.extract_strided_slice %206 {offsets = [0, 96], sizes = [8, 32], strides = [1, 1]} : vector<8x128xf32> to vector<8x32xf32>
    %212 = arith.mulf %209, %196 : vector<8x32xf32>
    %213 = arith.mulf %208, %210 : vector<8x32xf32>
    %214 = arith.addf %212, %213 : vector<8x32xf32>
    %215 = math.tanh %214 : vector<8x32xf32>
    %216 = arith.mulf %211, %215 : vector<8x32xf32>
    %217 = vector.extract_strided_slice %159 {offsets = [24, 0], sizes = [8, 128], strides = [1, 1]} : vector<64x128xf32> to vector<8x128xf32>
    %cst_41 = arith.constant dense<0.000000e+00> : vector<8x128xf32>
    %218 = tpu.matmul %216, %160, %cst_41 {dimension_numbers = #tpu.dot_dimension_numbers<[1], [0], [0], [1], [0, 0, 1, 1], [], []>} : vector<8x32xf32>, vector<32x128xf32>, vector<8x128xf32> -> vector<8x128xf32>
    %219 = arith.addf %217, %218 : vector<8x128xf32>
    %220 = arith.negf %219 : vector<8x128xf32>
    %221 = math.exp %220 : vector<8x128xf32>
    %cst_42 = arith.constant 1.000000e+00 : f32
    %222 = vector.broadcast %cst_42 : f32 to vector<8x128xf32>
    %223 = arith.addf %222, %221 : vector<8x128xf32>
    %224 = arith.divf %222, %223 : vector<8x128xf32>
    %225 = math.tanh %219 : vector<8x128xf32>
    %226 = vector.extract_strided_slice %224 {offsets = [0, 0], sizes = [8, 32], strides = [1, 1]} : vector<8x128xf32> to vector<8x32xf32>
    %227 = vector.extract_strided_slice %224 {offsets = [0, 32], sizes = [8, 32], strides = [1, 1]} : vector<8x128xf32> to vector<8x32xf32>
    %228 = vector.extract_strided_slice %225 {offsets = [0, 64], sizes = [8, 32], strides = [1, 1]} : vector<8x128xf32> to vector<8x32xf32>
    %229 = vector.extract_strided_slice %224 {offsets = [0, 96], sizes = [8, 32], strides = [1, 1]} : vector<8x128xf32> to vector<8x32xf32>
    %230 = arith.mulf %227, %214 : vector<8x32xf32>
    %231 = arith.mulf %226, %228 : vector<8x32xf32>
    %232 = arith.addf %230, %231 : vector<8x32xf32>
    %233 = math.tanh %232 : vector<8x32xf32>
    %234 = arith.mulf %229, %233 : vector<8x32xf32>
    %235 = vector.extract_strided_slice %159 {offsets = [32, 0], sizes = [8, 128], strides = [1, 1]} : vector<64x128xf32> to vector<8x128xf32>
    %cst_43 = arith.constant dense<0.000000e+00> : vector<8x128xf32>
    %236 = tpu.matmul %234, %160, %cst_43 {dimension_numbers = #tpu.dot_dimension_numbers<[1], [0], [0], [1], [0, 0, 1, 1], [], []>} : vector<8x32xf32>, vector<32x128xf32>, vector<8x128xf32> -> vector<8x128xf32>
    %237 = arith.addf %235, %236 : vector<8x128xf32>
    %238 = arith.negf %237 : vector<8x128xf32>
    %239 = math.exp %238 : vector<8x128xf32>
    %cst_44 = arith.constant 1.000000e+00 : f32
    %240 = vector.broadcast %cst_44 : f32 to vector<8x128xf32>
    %241 = arith.addf %240, %239 : vector<8x128xf32>
    %242 = arith.divf %240, %241 : vector<8x128xf32>
    %243 = math.tanh %237 : vector<8x128xf32>
    %244 = vector.extract_strided_slice %242 {offsets = [0, 0], sizes = [8, 32], strides = [1, 1]} : vector<8x128xf32> to vector<8x32xf32>
    %245 = vector.extract_strided_slice %242 {offsets = [0, 32], sizes = [8, 32], strides = [1, 1]} : vector<8x128xf32> to vector<8x32xf32>
    %246 = vector.extract_strided_slice %243 {offsets = [0, 64], sizes = [8, 32], strides = [1, 1]} : vector<8x128xf32> to vector<8x32xf32>
    %247 = vector.extract_strided_slice %242 {offsets = [0, 96], sizes = [8, 32], strides = [1, 1]} : vector<8x128xf32> to vector<8x32xf32>
    %248 = arith.mulf %245, %232 : vector<8x32xf32>
    %249 = arith.mulf %244, %246 : vector<8x32xf32>
    %250 = arith.addf %248, %249 : vector<8x32xf32>
    %251 = math.tanh %250 : vector<8x32xf32>
    %252 = arith.mulf %247, %251 : vector<8x32xf32>
    %253 = vector.extract_strided_slice %159 {offsets = [40, 0], sizes = [8, 128], strides = [1, 1]} : vector<64x128xf32> to vector<8x128xf32>
    %cst_45 = arith.constant dense<0.000000e+00> : vector<8x128xf32>
    %254 = tpu.matmul %252, %160, %cst_45 {dimension_numbers = #tpu.dot_dimension_numbers<[1], [0], [0], [1], [0, 0, 1, 1], [], []>} : vector<8x32xf32>, vector<32x128xf32>, vector<8x128xf32> -> vector<8x128xf32>
    %255 = arith.addf %253, %254 : vector<8x128xf32>
    %256 = arith.negf %255 : vector<8x128xf32>
    %257 = math.exp %256 : vector<8x128xf32>
    %cst_46 = arith.constant 1.000000e+00 : f32
    %258 = vector.broadcast %cst_46 : f32 to vector<8x128xf32>
    %259 = arith.addf %258, %257 : vector<8x128xf32>
    %260 = arith.divf %258, %259 : vector<8x128xf32>
    %261 = math.tanh %255 : vector<8x128xf32>
    %262 = vector.extract_strided_slice %260 {offsets = [0, 0], sizes = [8, 32], strides = [1, 1]} : vector<8x128xf32> to vector<8x32xf32>
    %263 = vector.extract_strided_slice %260 {offsets = [0, 32], sizes = [8, 32], strides = [1, 1]} : vector<8x128xf32> to vector<8x32xf32>
    %264 = vector.extract_strided_slice %261 {offsets = [0, 64], sizes = [8, 32], strides = [1, 1]} : vector<8x128xf32> to vector<8x32xf32>
    %265 = vector.extract_strided_slice %260 {offsets = [0, 96], sizes = [8, 32], strides = [1, 1]} : vector<8x128xf32> to vector<8x32xf32>
    %266 = arith.mulf %263, %250 : vector<8x32xf32>
    %267 = arith.mulf %262, %264 : vector<8x32xf32>
    %268 = arith.addf %266, %267 : vector<8x32xf32>
    %269 = math.tanh %268 : vector<8x32xf32>
    %270 = arith.mulf %265, %269 : vector<8x32xf32>
    %271 = vector.extract_strided_slice %159 {offsets = [48, 0], sizes = [8, 128], strides = [1, 1]} : vector<64x128xf32> to vector<8x128xf32>
    %cst_47 = arith.constant dense<0.000000e+00> : vector<8x128xf32>
    %272 = tpu.matmul %270, %160, %cst_47 {dimension_numbers = #tpu.dot_dimension_numbers<[1], [0], [0], [1], [0, 0, 1, 1], [], []>} : vector<8x32xf32>, vector<32x128xf32>, vector<8x128xf32> -> vector<8x128xf32>
    %273 = arith.addf %271, %272 : vector<8x128xf32>
    %274 = arith.negf %273 : vector<8x128xf32>
    %275 = math.exp %274 : vector<8x128xf32>
    %cst_48 = arith.constant 1.000000e+00 : f32
    %276 = vector.broadcast %cst_48 : f32 to vector<8x128xf32>
    %277 = arith.addf %276, %275 : vector<8x128xf32>
    %278 = arith.divf %276, %277 : vector<8x128xf32>
    %279 = math.tanh %273 : vector<8x128xf32>
    %280 = vector.extract_strided_slice %278 {offsets = [0, 0], sizes = [8, 32], strides = [1, 1]} : vector<8x128xf32> to vector<8x32xf32>
    %281 = vector.extract_strided_slice %278 {offsets = [0, 32], sizes = [8, 32], strides = [1, 1]} : vector<8x128xf32> to vector<8x32xf32>
    %282 = vector.extract_strided_slice %279 {offsets = [0, 64], sizes = [8, 32], strides = [1, 1]} : vector<8x128xf32> to vector<8x32xf32>
    %283 = vector.extract_strided_slice %278 {offsets = [0, 96], sizes = [8, 32], strides = [1, 1]} : vector<8x128xf32> to vector<8x32xf32>
    %284 = arith.mulf %281, %268 : vector<8x32xf32>
    %285 = arith.mulf %280, %282 : vector<8x32xf32>
    %286 = arith.addf %284, %285 : vector<8x32xf32>
    %287 = math.tanh %286 : vector<8x32xf32>
    %288 = arith.mulf %283, %287 : vector<8x32xf32>
    %289 = vector.extract_strided_slice %159 {offsets = [56, 0], sizes = [8, 128], strides = [1, 1]} : vector<64x128xf32> to vector<8x128xf32>
    %cst_49 = arith.constant dense<0.000000e+00> : vector<8x128xf32>
    %290 = tpu.matmul %288, %160, %cst_49 {dimension_numbers = #tpu.dot_dimension_numbers<[1], [0], [0], [1], [0, 0, 1, 1], [], []>} : vector<8x32xf32>, vector<32x128xf32>, vector<8x128xf32> -> vector<8x128xf32>
    %291 = arith.addf %289, %290 : vector<8x128xf32>
    %292 = arith.negf %291 : vector<8x128xf32>
    %293 = math.exp %292 : vector<8x128xf32>
    %cst_50 = arith.constant 1.000000e+00 : f32
    %294 = vector.broadcast %cst_50 : f32 to vector<8x128xf32>
    %295 = arith.addf %294, %293 : vector<8x128xf32>
    %296 = arith.divf %294, %295 : vector<8x128xf32>
    %297 = math.tanh %291 : vector<8x128xf32>
    %298 = vector.extract_strided_slice %296 {offsets = [0, 0], sizes = [8, 32], strides = [1, 1]} : vector<8x128xf32> to vector<8x32xf32>
    %299 = vector.extract_strided_slice %296 {offsets = [0, 32], sizes = [8, 32], strides = [1, 1]} : vector<8x128xf32> to vector<8x32xf32>
    %300 = vector.extract_strided_slice %297 {offsets = [0, 64], sizes = [8, 32], strides = [1, 1]} : vector<8x128xf32> to vector<8x32xf32>
    %301 = vector.extract_strided_slice %296 {offsets = [0, 96], sizes = [8, 32], strides = [1, 1]} : vector<8x128xf32> to vector<8x32xf32>
    %302 = arith.mulf %299, %286 : vector<8x32xf32>
    %303 = arith.mulf %298, %300 : vector<8x32xf32>
    %304 = arith.addf %302, %303 : vector<8x32xf32>
    %305 = math.tanh %304 : vector<8x32xf32>
    %306 = arith.mulf %301, %305 : vector<8x32xf32>
    %cst_51 = arith.constant dense<0.000000e+00> : vector<8xf32>
    %307 = vector.multi_reduction <add>, %306, %cst_51 [1] : vector<8x32xf32> to vector<8xf32>
    %308 = vector.shape_cast %307 : vector<8xf32> to vector<8x1xf32>
    %cst_52 = arith.constant 3.200000e+01 : f32
    %309 = vector.broadcast %cst_52 : f32 to vector<8x1xf32>
    %310 = arith.divf %308, %309 : vector<8x1xf32>
    %311 = vector.broadcast %310 : vector<8x1xf32> to vector<8x32xf32>
    %312 = arith.subf %306, %311 : vector<8x32xf32>
    %313 = vector.broadcast %310 : vector<8x1xf32> to vector<8x32xf32>
    %314 = arith.subf %306, %313 : vector<8x32xf32>
    %315 = arith.mulf %312, %314 : vector<8x32xf32>
    %cst_53 = arith.constant dense<0.000000e+00> : vector<8xf32>
    %316 = vector.multi_reduction <add>, %315, %cst_53 [1] : vector<8x32xf32> to vector<8xf32>
    %317 = vector.shape_cast %316 : vector<8xf32> to vector<8x1xf32>
    %cst_54 = arith.constant 3.200000e+01 : f32
    %318 = vector.broadcast %cst_54 : f32 to vector<8x1xf32>
    %319 = arith.divf %317, %318 : vector<8x1xf32>
    %320 = vector.broadcast %310 : vector<8x1xf32> to vector<8x32xf32>
    %321 = arith.subf %306, %320 : vector<8x32xf32>
    %cst_55 = arith.constant 9.99999974E-6 : f32
    %322 = vector.broadcast %cst_55 : f32 to vector<8x1xf32>
    %323 = arith.addf %319, %322 : vector<8x1xf32>
    %324 = math.rsqrt %323 : vector<8x1xf32>
    %325 = vector.broadcast %324 : vector<8x1xf32> to vector<8x32xf32>
    %326 = arith.mulf %321, %325 : vector<8x32xf32>
    %c0_56 = arith.constant 0 : index
    %c0_57 = arith.constant 0 : index
    %327 = vector.load %arg8[%c0_56, %c0_57] : memref<2x32xf32, #tpu.memory_space<vmem>>, vector<1x32xf32>
    %328 = vector.shape_cast %327 : vector<1x32xf32> to vector<32xf32>
    %329 = vector.shape_cast %328 : vector<32xf32> to vector<1x32xf32>
    %330 = vector.broadcast %329 : vector<1x32xf32> to vector<8x32xf32>
    %331 = arith.mulf %326, %330 : vector<8x32xf32>
    %c0_58 = arith.constant 0 : index
    %c0_59 = arith.constant 0 : index
    %332 = vector.load %arg9[%c0_58, %c0_59] : memref<2x32xf32, #tpu.memory_space<vmem>>, vector<1x32xf32>
    %333 = vector.shape_cast %332 : vector<1x32xf32> to vector<32xf32>
    %334 = vector.shape_cast %333 : vector<32xf32> to vector<1x32xf32>
    %335 = vector.broadcast %334 : vector<1x32xf32> to vector<8x32xf32>
    %336 = arith.addf %331, %335 : vector<8x32xf32>
    %cst_60 = arith.constant dense<0.000000e+00> : vector<8xf32>
    %337 = vector.multi_reduction <add>, %336, %cst_60 [1] : vector<8x32xf32> to vector<8xf32>
    %338 = vector.shape_cast %337 : vector<8xf32> to vector<8x1xf32>
    %cst_61 = arith.constant 3.200000e+01 : f32
    %339 = vector.broadcast %cst_61 : f32 to vector<8x1xf32>
    %340 = arith.divf %338, %339 : vector<8x1xf32>
    %341 = vector.broadcast %340 : vector<8x1xf32> to vector<8x32xf32>
    %342 = arith.subf %336, %341 : vector<8x32xf32>
    %343 = vector.broadcast %340 : vector<8x1xf32> to vector<8x32xf32>
    %344 = arith.subf %336, %343 : vector<8x32xf32>
    %345 = arith.mulf %342, %344 : vector<8x32xf32>
    %cst_62 = arith.constant dense<0.000000e+00> : vector<8xf32>
    %346 = vector.multi_reduction <add>, %345, %cst_62 [1] : vector<8x32xf32> to vector<8xf32>
    %347 = vector.shape_cast %346 : vector<8xf32> to vector<8x1xf32>
    %cst_63 = arith.constant 3.200000e+01 : f32
    %348 = vector.broadcast %cst_63 : f32 to vector<8x1xf32>
    %349 = arith.divf %347, %348 : vector<8x1xf32>
    %350 = vector.broadcast %340 : vector<8x1xf32> to vector<8x32xf32>
    %351 = arith.subf %336, %350 : vector<8x32xf32>
    %cst_64 = arith.constant 9.99999974E-6 : f32
    %352 = vector.broadcast %cst_64 : f32 to vector<8x1xf32>
    %353 = arith.addf %349, %352 : vector<8x1xf32>
    %354 = math.rsqrt %353 : vector<8x1xf32>
    %355 = vector.broadcast %354 : vector<8x1xf32> to vector<8x32xf32>
    %356 = arith.mulf %351, %355 : vector<8x32xf32>
    %c1 = arith.constant 1 : index
    %c0_65 = arith.constant 0 : index
    %357 = vector.load %arg8[%c1, %c0_65] : memref<2x32xf32, #tpu.memory_space<vmem>>, vector<1x32xf32>
    %358 = vector.shape_cast %357 : vector<1x32xf32> to vector<32xf32>
    %359 = vector.shape_cast %358 : vector<32xf32> to vector<1x32xf32>
    %360 = vector.broadcast %359 : vector<1x32xf32> to vector<8x32xf32>
    %361 = arith.mulf %356, %360 : vector<8x32xf32>
    %c1_66 = arith.constant 1 : index
    %c0_67 = arith.constant 0 : index
    %362 = vector.load %arg9[%c1_66, %c0_67] : memref<2x32xf32, #tpu.memory_space<vmem>>, vector<1x32xf32>
    %363 = vector.shape_cast %362 : vector<1x32xf32> to vector<32xf32>
    %364 = vector.shape_cast %363 : vector<32xf32> to vector<1x32xf32>
    %365 = vector.broadcast %364 : vector<1x32xf32> to vector<8x32xf32>
    %366 = arith.addf %361, %365 : vector<8x32xf32>
    %c0_68 = arith.constant 0 : index
    %c0_69 = arith.constant 0 : index
    %367 = vector.load %arg10[%c0_68, %c0_69] : memref<32x16xf32, #tpu.memory_space<vmem>>, vector<32x16xf32>
    %cst_70 = arith.constant dense<0.000000e+00> : vector<8x16xf32>
    %368 = tpu.matmul %366, %367, %cst_70 {dimension_numbers = #tpu.dot_dimension_numbers<[1], [0], [0], [1], [0, 0, 1, 1], [], []>} : vector<8x32xf32>, vector<32x16xf32>, vector<8x16xf32> -> vector<8x16xf32>
    %c0_71 = arith.constant 0 : index
    %c0_72 = arith.constant 0 : index
    %369 = vector.load %arg11[%c0_71, %c0_72] : memref<1x16xf32, #tpu.memory_space<vmem>>, vector<1x16xf32>
    %370 = vector.broadcast %369 : vector<1x16xf32> to vector<8x16xf32>
    %371 = arith.addf %368, %370 : vector<8x16xf32>
    %cst_73 = arith.constant 0.000000e+00 : f32
    %372 = vector.broadcast %cst_73 : f32 to vector<8x16xf32>
    %373 = arith.maximumf %371, %372 : vector<8x16xf32>
    %c0_74 = arith.constant 0 : index
    %c0_75 = arith.constant 0 : index
    %374 = vector.load %arg12[%c0_74, %c0_75] : memref<16x128xf32, #tpu.memory_space<vmem>>, vector<16x128xf32>
    %cst_76 = arith.constant dense<0.000000e+00> : vector<8x128xf32>
    %375 = tpu.matmul %373, %374, %cst_76 {dimension_numbers = #tpu.dot_dimension_numbers<[1], [0], [0], [1], [0, 0, 1, 1], [], []>} : vector<8x16xf32>, vector<16x128xf32>, vector<8x128xf32> -> vector<8x128xf32>
    %c0_77 = arith.constant 0 : index
    %c0_78 = arith.constant 0 : index
    %376 = vector.load %arg13[%c0_77, %c0_78] : memref<1x128xf32, #tpu.memory_space<vmem>>, vector<1x128xf32>
    %377 = vector.broadcast %376 : vector<1x128xf32> to vector<8x128xf32>
    %378 = arith.addf %375, %377 : vector<8x128xf32>
    %cst_79 = arith.constant 0.000000e+00 : f32
    %379 = vector.broadcast %cst_79 : f32 to vector<8x128xf32>
    %380 = arith.maximumf %378, %379 : vector<8x128xf32>
    %c0_80 = arith.constant 0 : index
    %c0_81 = arith.constant 0 : index
    %381 = vector.load %arg14[%c0_80, %c0_81] : memref<8x128xf32, #tpu.memory_space<vmem>>, vector<8x128xf32>
    tpu.vector_store %arg14[%c0_80, %c0_81], %380 {strides = array<i32>} : memref<8x128xf32, #tpu.memory_space<vmem>>, vector<8x128xf32>,
    return
  }
  func.func @transform_0(%arg0: i32) -> (i32, i32, i32) {
    %c0_i32 = arith.constant 0 : i32
    %c0_i32_0 = arith.constant 0 : i32
    %c0_i32_1 = arith.constant 0 : i32
    return %c0_i32, %arg0, %c0_i32_0 : i32, i32, i32
  }
  func.func @transform_1(%arg0: i32) -> (i32, i32) {
    %c0_i32 = arith.constant 0 : i32
    %c0_i32_0 = arith.constant 0 : i32
    %c0_i32_1 = arith.constant 0 : i32
    return %c0_i32, %c0_i32_0 : i32, i32
  }
  func.func @transform_2(%arg0: i32) -> (i32, i32) {
    %c0_i32 = arith.constant 0 : i32
    %c0_i32_0 = arith.constant 0 : i32
    %c0_i32_1 = arith.constant 0 : i32
    return %c0_i32, %c0_i32_0 : i32, i32
  }
  func.func @transform_3(%arg0: i32) -> (i32, i32) {
    %c0_i32 = arith.constant 0 : i32
    %c0_i32_0 = arith.constant 0 : i32
    %c0_i32_1 = arith.constant 0 : i32
    return %c0_i32, %c0_i32_0 : i32, i32
  }
  func.func @transform_4(%arg0: i32) -> (i32, i32) {
    %c0_i32 = arith.constant 0 : i32
    %c0_i32_0 = arith.constant 0 : i32
    %c0_i32_1 = arith.constant 0 : i32
    return %c0_i32, %c0_i32_0 : i32, i32
  }
  func.func @transform_5(%arg0: i32) -> (i32, i32) {
    %c0_i32 = arith.constant 0 : i32
    %c0_i32_0 = arith.constant 0 : i32
    %c0_i32_1 = arith.constant 0 : i32
    return %c0_i32, %c0_i32_0 : i32, i32
  }
  func.func @transform_6(%arg0: i32) -> (i32, i32) {
    %c0_i32 = arith.constant 0 : i32
    %c0_i32_0 = arith.constant 0 : i32
    %c0_i32_1 = arith.constant 0 : i32
    return %c0_i32, %c0_i32_0 : i32, i32
  }
  func.func @transform_7(%arg0: i32) -> (i32, i32) {
    %c0_i32 = arith.constant 0 : i32
    %c0_i32_0 = arith.constant 0 : i32
    %c0_i32_1 = arith.constant 0 : i32
    return %c0_i32, %c0_i32_0 : i32, i32
  }
  func.func @transform_8(%arg0: i32) -> (i32, i32) {
    %c0_i32 = arith.constant 0 : i32
    %c0_i32_0 = arith.constant 0 : i32
    %c0_i32_1 = arith.constant 0 : i32
    return %c0_i32, %c0_i32_0 : i32, i32
  }
  func.func @transform_9(%arg0: i32) -> (i32, i32) {
    %c0_i32 = arith.constant 0 : i32
    %c0_i32_0 = arith.constant 0 : i32
    %c0_i32_1 = arith.constant 0 : i32
    return %c0_i32, %c0_i32_0 : i32, i32
  }
  func.func @transform_10(%arg0: i32) -> (i32, i32) {
    %c0_i32 = arith.constant 0 : i32
    %c0_i32_0 = arith.constant 0 : i32
    %c0_i32_1 = arith.constant 0 : i32
    return %c0_i32, %c0_i32_0 : i32, i32
  }
  func.func @transform_11(%arg0: i32) -> (i32, i32) {
    %c0_i32 = arith.constant 0 : i32
    %c0_i32_0 = arith.constant 0 : i32
    %c0_i32_1 = arith.constant 0 : i32
    return %c0_i32, %c0_i32_0 : i32, i32
  }
  func.func @transform_12(%arg0: i32) -> (i32, i32) {
    %c0_i32 = arith.constant 0 : i32
    %c0_i32_0 = arith.constant 0 : i32
    %c0_i32_1 = arith.constant 0 : i32
    return %c0_i32, %c0_i32_0 : i32, i32
  }
  func.func @transform_13(%arg0: i32) -> (i32, i32) {
    %c0_i32 = arith.constant 0 : i32
    %c0_i32_0 = arith.constant 0 : i32
    return %arg0, %c0_i32 : i32, i32
  }
}

</mosaic_0001>

<llo_original>
// kernel: tpu_custom_call.1
$region0: #{tpu_custom_call.1}
  #allocation0 [shape = 'u32[]', space=smem, size = 0x4, offset = 0x4, fixed_abs, tag = 'smem constant byte address 0x4 - core index']
  #allocation1 [shape = 'u32[144,128]{1,0:T(1,128)}', space=vmem, size = 0x12000, scoped, tag = 'internal scratch']
  %s0 = inlined_call_operand.hbm [shape: f32[8,8,8], index: 0, kind: input, shape index: {}]
  %s1 = inlined_call_operand.hbm [shape: f32[8,128], index: 1, kind: input, shape index: {}]
  %s2 = inlined_call_operand.vmem [shape: f32[32,128], index: 2, kind: input, shape index: {}]
  %s3 = inlined_call_operand.hbm [shape: f32[1,128], index: 3, kind: input, shape index: {}]
  %s4 = inlined_call_operand.hbm [shape: f32[32,128], index: 4, kind: input, shape index: {}]
  %s5 = inlined_call_operand.hbm [shape: f32[32,128], index: 5, kind: input, shape index: {}]
  %s6 = inlined_call_operand.hbm [shape: f32[1,128], index: 6, kind: input, shape index: {}]
  %s7 = inlined_call_operand.hbm [shape: f32[2,32], index: 7, kind: input, shape index: {}]
  %s8 = inlined_call_operand.hbm [shape: f32[2,32], index: 8, kind: input, shape index: {}]
  %s9 = inlined_call_operand.vmem [shape: f32[32,16], index: 9, kind: input, shape index: {}]
  %s10 = inlined_call_operand.vmem [shape: f32[1,16], index: 10, kind: input, shape index: {}]
  %s11 = inlined_call_operand.vmem [shape: f32[16,128], index: 11, kind: input, shape index: {}]
  %s12 = inlined_call_operand.vmem [shape: f32[1,128], index: 12, kind: input, shape index: {}]
  %s13 = inlined_call_operand.hbm [shape: f32[8,128], index: 13, kind: output, shape index: {}]
  %s14 = sld [smem:[#allocation0]]
  $region94: #{tpu_custom_call.1} parent=0
    _
  %s16 = ssub.s32 1, %s14
  %s17 = scalar_select 0, %s16, %s14
  $region1: #{tpu_custom_call.1} parent=0
    #allocation2 [shape = 'u8[32768]{0}', space=vmem, size = 0x8000, scoped, tag = 'input window, operand 0, single buffered']
    #allocation3 [shape = 's32[1]{0}', space=sflag, size = 0x4, scoped, tag = 'scoped memory for tpu_custom_call.1']
    #allocation4 [shape = 's32[1]{0}', space=sflag, size = 0x4, scoped, tag = 'scoped memory for tpu_custom_call.1']
    #allocation5 [shape = 'u8[4096]{0}', space=vmem, size = 0x1000, scoped, tag = 'input window, operand 1, single buffered']
    #allocation6 [shape = 's32[1]{0}', space=sflag, size = 0x4, scoped, tag = 'scoped memory for tpu_custom_call.1']
    #allocation7 [shape = 'u8[512]{0}', space=vmem, size = 0x400, scoped, tag = 'input window, operand 3, single buffered']
    #allocation8 [shape = 'u8[16384]{0}', space=vmem, size = 0x4000, scoped, tag = 'input window, operand 4, single buffered']
    #allocation9 [shape = 's32[1]{0}', space=sflag, size = 0x4, scoped, tag = 'scoped memory for tpu_custom_call.1']
    #allocation10 [shape = 'u8[16384]{0}', space=vmem, size = 0x4000, scoped, tag = 'input window, operand 5, single buffered']
    #allocation11 [shape = 'u8[512]{0}', space=vmem, size = 0x400, scoped, tag = 'input window, operand 6, single buffered']
    #allocation12 [shape = 's32[1]{0}', space=sflag, size = 0x4, scoped, tag = 'scoped memory for tpu_custom_call.1']
    #allocation13 [shape = 'u8[1024]{0}', space=vmem, size = 0x400, scoped, tag = 'input window, operand 7, single buffered']
    #allocation14 [shape = 'u8[1024]{0}', space=vmem, size = 0x400, scoped, tag = 'input window, operand 8, single buffered']
    #allocation15 [shape = 's32[1]{0}', space=sflag, size = 0x4, scoped, tag = 'scoped memory for tpu_custom_call.1']
    #allocation16 [shape = 'u8[4096]{0}', space=vmem, size = 0x1000, scoped, tag = 'output window, operand 0, single buffered']
    %18 = vsyncpa [#allocation3], 0
    %19 = vsyncpa [#allocation6], 0
    %20 = vsyncpa [#allocation9], 0
    %21 = vsyncpa [#allocation12], 0
    %22 = vsyncpa [#allocation15], 0
    %23 = vsyncpa [#allocation4], 0
    // Predicated region
    $region2: #{tpu_custom_call.1} parent=1 // pred_check
      _
    $region3: #{tpu_custom_call.1} parent=1 // pred_check_branch
      %25 = sbr.rel (0) target = $region5
    $region4: #{tpu_custom_call.1} parent=1 // pred_region
      %s27 = ssub.s32 1024, 1024
      %28 = vsyncadd [#allocation3], %s27
      %s29 = sshll.u32 [#allocation2], 4
      %s30 = int_to_ptr.vmem [resolvable:$true] %s29
      %35 = dma.hbm_to_vmem [thread:$0]  %s0, 1024, %s30, [#allocation3], 128, 128, 8
    $region5: #{tpu_custom_call.1} parent=1 // pred_fallthru
      _
    // Predicated region
    $region6: #{tpu_custom_call.1} parent=1 // pred_check
      _
    $region7: #{tpu_custom_call.1} parent=1 // pred_check_branch
      %37 = sbr.rel (0) target = $region9
    $region8: #{tpu_custom_call.1} parent=1 // pred_region
      %s39 = ssub.s32 128, 128
      %40 = vsyncadd [#allocation6], %s39
      %s42 = sshll.u32 [#allocation5], 4
      %s43 = int_to_ptr.vmem [resolvable:$true] %s42
      %45 = dma.hbm_to_vmem [thread:$0]  %s1, 128, %s43, [#allocation6]
    $region9: #{tpu_custom_call.1} parent=1 // pred_fallthru
      _
    // Predicated region
    $region10: #{tpu_custom_call.1} parent=1 // pred_check
      _
    $region11: #{tpu_custom_call.1} parent=1 // pred_check_branch
      %47 = sbr.rel (0) target = $region13
    $region12: #{tpu_custom_call.1} parent=1 // pred_region
      _
    $region13: #{tpu_custom_call.1} parent=1 // pred_fallthru
      _
    // Predicated region
    $region14: #{tpu_custom_call.1} parent=1 // pred_check
      _
    $region15: #{tpu_custom_call.1} parent=1 // pred_check_branch
      %49 = sbr.rel (0) target = $region17
    $region16: #{tpu_custom_call.1} parent=1 // pred_region
      %s51 = ssub.s32 16, 16
      %52 = vsyncadd [#allocation6], %s51
      %s54 = sshll.u32 [#allocation7], 4
      %s55 = int_to_ptr.vmem [resolvable:$true] %s54
      %57 = dma.hbm_to_vmem [thread:$0]  %s3, 16, %s55, [#allocation6]
    $region17: #{tpu_custom_call.1} parent=1 // pred_fallthru
      _
    // Predicated region
    $region18: #{tpu_custom_call.1} parent=1 // pred_check
      _
    $region19: #{tpu_custom_call.1} parent=1 // pred_check_branch
      %59 = sbr.rel (0) target = $region21
    $region20: #{tpu_custom_call.1} parent=1 // pred_region
      %s61 = ssub.s32 512, 512
      %62 = vsyncadd [#allocation9], %s61
      %s63 = sshll.u32 [#allocation8], 4
      %s64 = int_to_ptr.vmem [resolvable:$true] %s63
      %69 = dma.hbm_to_vmem [thread:$0]  %s4, 512, %s64, [#allocation9], 128, 128, 8
    $region21: #{tpu_custom_call.1} parent=1 // pred_fallthru
      _
    // Predicated region
    $region22: #{tpu_custom_call.1} parent=1 // pred_check
      _
    $region23: #{tpu_custom_call.1} parent=1 // pred_check_branch
      %71 = sbr.rel (0) target = $region25
    $region24: #{tpu_custom_call.1} parent=1 // pred_region
      %s73 = ssub.s32 512, 512
      %74 = vsyncadd [#allocation9], %s73
      %s75 = sshll.u32 [#allocation10], 4
      %s76 = int_to_ptr.vmem [resolvable:$true] %s75
      %81 = dma.hbm_to_vmem [thread:$0]  %s5, 512, %s76, [#allocation9], 128, 128, 8
    $region25: #{tpu_custom_call.1} parent=1 // pred_fallthru
      _
    // Predicated region
    $region26: #{tpu_custom_call.1} parent=1 // pred_check
      _
    $region27: #{tpu_custom_call.1} parent=1 // pred_check_branch
      %83 = sbr.rel (0) target = $region29
    $region28: #{tpu_custom_call.1} parent=1 // pred_region
      %s85 = ssub.s32 16, 16
      %86 = vsyncadd [#allocation12], %s85
      %s88 = sshll.u32 [#allocation11], 4
      %s89 = int_to_ptr.vmem [resolvable:$true] %s88
      %91 = dma.hbm_to_vmem [thread:$0]  %s6, 16, %s89, [#allocation12]
    $region29: #{tpu_custom_call.1} parent=1 // pred_fallthru
      _
    // Predicated region
    $region30: #{tpu_custom_call.1} parent=1 // pred_check
      _
    $region31: #{tpu_custom_call.1} parent=1 // pred_check_branch
      %93 = sbr.rel (0) target = $region33
    $region32: #{tpu_custom_call.1} parent=1 // pred_region
      %s95 = ssub.s32 32, 32
      %96 = vsyncadd [#allocation12], %s95
      %s98 = sshll.u32 [#allocation13], 4
      %s99 = int_to_ptr.vmem [resolvable:$true] %s98
      %101 = dma.hbm_to_vmem [thread:$0]  %s7, 32, %s99, [#allocation12]
    $region33: #{tpu_custom_call.1} parent=1 // pred_fallthru
      _
    // Predicated region
    $region34: #{tpu_custom_call.1} parent=1 // pred_check
      _
    $region35: #{tpu_custom_call.1} parent=1 // pred_check_branch
      %103 = sbr.rel (0) target = $region37
    $region36: #{tpu_custom_call.1} parent=1 // pred_region
      %s105 = ssub.s32 32, 32
      %106 = vsyncadd [#allocation15], %s105
      %s108 = sshll.u32 [#allocation14], 4
      %s109 = int_to_ptr.vmem [resolvable:$true] %s108
      %111 = dma.hbm_to_vmem [thread:$0]  %s8, 32, %s109, [#allocation15]
    $region37: #{tpu_custom_call.1} parent=1 // pred_fallthru
      _
    // Predicated region
    $region38: #{tpu_custom_call.1} parent=1 // pred_check
      _
    $region39: #{tpu_custom_call.1} parent=1 // pred_check_branch
      %113 = sbr.rel (0) target = $region41
    $region40: #{tpu_custom_call.1} parent=1 // pred_region
      _
    $region41: #{tpu_custom_call.1} parent=1 // pred_fallthru
      _
    // Predicated region
    $region42: #{tpu_custom_call.1} parent=1 // pred_check
      _
    $region43: #{tpu_custom_call.1} parent=1 // pred_check_branch
      %115 = sbr.rel (0) target = $region45
    $region44: #{tpu_custom_call.1} parent=1 // pred_region
      _
    $region45: #{tpu_custom_call.1} parent=1 // pred_fallthru
      _
    // Predicated region
    $region46: #{tpu_custom_call.1} parent=1 // pred_check
      _
    $region47: #{tpu_custom_call.1} parent=1 // pred_check_branch
      %117 = sbr.rel (0) target = $region49
    $region48: #{tpu_custom_call.1} parent=1 // pred_region
      _
    $region49: #{tpu_custom_call.1} parent=1 // pred_fallthru
      _
    // Predicated region
    $region50: #{tpu_custom_call.1} parent=1 // pred_check
      _
    $region51: #{tpu_custom_call.1} parent=1 // pred_check_branch
      %119 = sbr.rel (0) target = $region53
    $region52: #{tpu_custom_call.1} parent=1 // pred_region
      _
    $region53: #{tpu_custom_call.1} parent=1 // pred_fallthru
      _
    // Predicated region
    $region54: #{tpu_custom_call.1} parent=1 // pred_check
      _
    $region55: #{tpu_custom_call.1} parent=1 // pred_check_branch
      %121 = sbr.rel (0) target = $region57
    $region56: #{tpu_custom_call.1} parent=1 // pred_region
      %122 = dma.done [#allocation3], 1024
    $region57: #{tpu_custom_call.1} parent=1 // pred_fallthru
      _
    // Predicated region
    $region58: #{tpu_custom_call.1} parent=1 // pred_check
      _
    $region59: #{tpu_custom_call.1} parent=1 // pred_check_branch
      %124 = sbr.rel (0) target = $region61
    $region60: #{tpu_custom_call.1} parent=1 // pred_region
      %125 = dma.done [#allocation6], 128
    $region61: #{tpu_custom_call.1} parent=1 // pred_fallthru
      _
    // Predicated region
    $region62: #{tpu_custom_call.1} parent=1 // pred_check
      _
    $region63: #{tpu_custom_call.1} parent=1 // pred_check_branch
      %127 = sbr.rel (0) target = $region65
    $region64: #{tpu_custom_call.1} parent=1 // pred_region
      %128 = dma.done [#allocation6], 16
    $region65: #{tpu_custom_call.1} parent=1 // pred_fallthru
      _
    // Predicated region
    $region66: #{tpu_custom_call.1} parent=1 // pred_check
      _
    $region67: #{tpu_custom_call.1} parent=1 // pred_check_branch
      %130 = sbr.rel (0) target = $region69
    $region68: #{tpu_custom_call.1} parent=1 // pred_region
      %131 = dma.done [#allocation9], 512
    $region69: #{tpu_custom_call.1} parent=1 // pred_fallthru
      _
    // Predicated region
    $region70: #{tpu_custom_call.1} parent=1 // pred_check
      _
    $region71: #{tpu_custom_call.1} parent=1 // pred_check_branch
      %133 = sbr.rel (0) target = $region73
    $region72: #{tpu_custom_call.1} parent=1 // pred_region
      %134 = dma.done [#allocation9], 512
    $region73: #{tpu_custom_call.1} parent=1 // pred_fallthru
      _
    // Predicated region
    $region74: #{tpu_custom_call.1} parent=1 // pred_check
      _
    $region75: #{tpu_custom_call.1} parent=1 // pred_check_branch
      %136 = sbr.rel (0) target = $region77
    $region76: #{tpu_custom_call.1} parent=1 // pred_region
      %137 = dma.done [#allocation12], 16
    $region77: #{tpu_custom_call.1} parent=1 // pred_fallthru
      _
    // Predicated region
    $region78: #{tpu_custom_call.1} parent=1 // pred_check
      _
    $region79: #{tpu_custom_call.1} parent=1 // pred_check_branch
      %139 = sbr.rel (0) target = $region81
    $region80: #{tpu_custom_call.1} parent=1 // pred_region
      %140 = dma.done [#allocation12], 32
    $region81: #{tpu_custom_call.1} parent=1 // pred_fallthru
      _
    // Predicated region
    $region82: #{tpu_custom_call.1} parent=1 // pred_check
      _
    $region83: #{tpu_custom_call.1} parent=1 // pred_check_branch
      %142 = sbr.rel (0) target = $region85
    $region84: #{tpu_custom_call.1} parent=1 // pred_region
      %143 = dma.done [#allocation15], 32
    $region85: #{tpu_custom_call.1} parent=1 // pred_fallthru
      _
    %v144 = vld [vmem:[#allocation2] sm:$0xff]
    %v145 = vld [vmem:[#allocation2 + $0x8] sm:$0xff]
    %v146 = vld [vmem:[#allocation2 + $0x10] sm:$0xff]
    %v147 = vld [vmem:[#allocation2 + $0x18] sm:$0xff]
    %v148 = vld [vmem:[#allocation2 + $0x20] sm:$0xff]
    %v149 = vld [vmem:[#allocation2 + $0x28] sm:$0xff]
    %v150 = vld [vmem:[#allocation2 + $0x30] sm:$0xff]
    %v151 = vld [vmem:[#allocation2 + $0x38] sm:$0xff]
    %v152 = vld [vmem:[#allocation5] sm:$0xff]
    %v153 = vld [vmem:[#allocation7] sm:$0x1]
    %v155 = vlaneseq
    %v156 = vshrl.u32 %v155, 7
    %v157 = vsub.s32 0, %v156
    %v158 = vrot.slane %v153, %v157
    %vm160 = vcmask 64512
    %v162 = vsel %vm160, %v144, 0
    %v165 = vsel %vm160, %v145, 0
    %v168 = vsel %vm160, %v146, 0
    %v171 = vsel %vm160, %v147, 0
    %v174 = vsel %vm160, %v148, 0
    %v177 = vsel %vm160, %v149, 0
    %v180 = vsel %vm160, %v150, 0
    %v183 = vsel %vm160, %v151, 0
    %185 = vmatprep.subr.mxu0 0.0
    %186 = vmatpush1.msra.mxu0 0.0
    %187 = vmatprep.subr.mxu0 0.0
    %188 = vmatpush1.msra.mxu0 0.0
    %189 = vmatprep.subr.mxu0 0.0
    %190 = vmatpush1.msra.mxu0 0.0
    %191 = vmatprep.subr.mxu0 0.0
    %192 = vmatpush1.msra.mxu0 0.0
    %193 = vmatprep.subr.mxu0 0.0
    %194 = vmatpush1.msra.mxu0 0.0
    %195 = vmatprep.subr.mxu0 0.0
    %196 = vmatpush1.msra.mxu0 0.0
    %197 = vmatprep.subr.mxu0 0.0
    %198 = vmatpush1.msra.mxu0 0.0
    %199 = vmatprep.subr.mxu0 0.0
    %200 = vmatpush1.msra.mxu0 0.0
    %201 = vmatprep.subr.mxu0 0.0
    %202 = vmatpush1.msra.mxu0 0.0
    %203 = vmatprep.subr.mxu0 0.0
    %204 = vmatpush1.msra.mxu0 0.0
    %205 = vmatprep.subr.mxu0 0.0
    %206 = vmatpush1.msra.mxu0 0.0
    %207 = vmatprep.subr.mxu0 0.0
    %208 = vmatpush1.msra.mxu0 0.0
    %209 = vmatprep.subr.mxu0 0.0
    %210 = vmatpush1.msra.mxu0 0.0
    %211 = vmatprep.subr.mxu0 0.0
    %212 = vmatpush1.msra.mxu0 0.0
    %213 = vmatprep.subr.mxu0 0.0
    %214 = vmatpush1.msra.mxu0 0.0
    %215 = vmatprep.subr.mxu0 0.0
    %216 = vmatpush1.msra.mxu0 %v152
    %217 = vmatprep.subr.mxu0 0.0
    %218 = vmatpush2.msra.mxu0 0.0
    %219 = vmatprep.subr.mxu0 0.0
    %220 = vmatpush2.msra.mxu0 0.0
    %221 = vmatprep.subr.mxu0 0.0
    %222 = vmatpush2.msra.mxu0 0.0
    %223 = vmatprep.subr.mxu0 0.0
    %224 = vmatpush2.msra.mxu0 0.0
    %225 = vmatprep.subr.mxu0 0.0
    %226 = vmatpush2.msra.mxu0 0.0
    %227 = vmatprep.subr.mxu0 0.0
    %228 = vmatpush2.msra.mxu0 0.0
    %229 = vmatprep.subr.mxu0 0.0
    %230 = vmatpush2.msra.mxu0 0.0
    %231 = vmatprep.subr.mxu0 0.0
    %232 = vmatpush2.msra.mxu0 0.0
    %233 = vmatprep.subr.mxu0 0.0
    %234 = vmatpush2.msra.mxu0 0.0
    %235 = vmatprep.subr.mxu0 0.0
    %236 = vmatpush2.msra.mxu0 0.0
    %237 = vmatprep.subr.mxu0 0.0
    %238 = vmatpush2.msra.mxu0 0.0
    %239 = vmatprep.subr.mxu0 0.0
    %240 = vmatpush2.msra.mxu0 0.0
    %241 = vmatprep.subr.mxu0 0.0
    %242 = vmatpush2.msra.mxu0 0.0
    %243 = vmatprep.subr.mxu0 0.0
    %244 = vmatpush2.msra.mxu0 0.0
    %245 = vmatprep.subr.mxu0 0.0
    %246 = vmatpush2.msra.mxu0 0.0
    %247 = vmatprep.subr.mxu0 0.0
    %248 = vmatpush2.msra.mxu0 0.0
    %249 = vmatprep.mubr.f32.mxu0 0.0
    %250 = vmatmul.mubr.f32.gmra.mxu0 %v162
    %v251 = vpop.f32.mrf.mxu0
    %v252 = vadd.f32 %v158, %v251
    %v253 = vpop.f32.mrf.mxu0
    %254 = vmatprep.mubr.f32.mxu0 0.0
    %255 = vmatmul.mubr.f32.gmra.mxu0 %v165
    %v256 = vpop.f32.mrf.mxu0
    %v257 = vadd.f32 %v158, %v256
    %v258 = vpop.f32.mrf.mxu0
    %259 = vmatprep.mubr.f32.mxu0 0.0
    %260 = vmatmul.mubr.f32.gmra.mxu0 %v168
    %v261 = vpop.f32.mrf.mxu0
    %v262 = vadd.f32 %v158, %v261
    %v263 = vpop.f32.mrf.mxu0
    %264 = vmatprep.mubr.f32.mxu0 0.0
    %265 = vmatmul.mubr.f32.gmra.mxu0 %v171
    %v266 = vpop.f32.mrf.mxu0
    %v267 = vadd.f32 %v158, %v266
    %v268 = vpop.f32.mrf.mxu0
    %269 = vmatprep.mubr.f32.mxu0 0.0
    %270 = vmatmul.mubr.f32.gmra.mxu0 %v174
    %v271 = vpop.f32.mrf.mxu0
    %v272 = vadd.f32 %v158, %v271
    %v273 = vpop.f32.mrf.mxu0
    %274 = vmatprep.mubr.f32.mxu0 0.0
    %275 = vmatmul.mubr.f32.gmra.mxu0 %v177
    %v276 = vpop.f32.mrf.mxu0
    %v277 = vadd.f32 %v158, %v276
    %v278 = vpop.f32.mrf.mxu0
    %279 = vmatprep.mubr.f32.mxu0 0.0
    %280 = vmatmul.mubr.f32.gmra.mxu0 %v180
    %v281 = vpop.f32.mrf.mxu0
    %v282 = vadd.f32 %v158, %v281
    %v283 = vpop.f32.mrf.mxu0
    %284 = vmatprep.mubr.f32.mxu0 0.0
    %285 = vmatmul.mubr.f32.gmra.mxu0 %v183
    %v286 = vpop.f32.mrf.mxu0
    %v287 = vadd.f32 %v158, %v286
    %v288 = vpop.f32.mrf.mxu0
    %289 = vdwg.mxu0
    %v290 = vld [vmem:[%s2] sm:$0xff]
    %v291 = vld [vmem:[%s2 + $0x8] sm:$0xff]
    %v292 = vld [vmem:[%s2 + $0x10] sm:$0xff]
    %v293 = vld [vmem:[%s2 + $0x18] sm:$0xff]
    %vm294 = vcmask 261120
    %v296 = vsel %vm294, 0.0, 0
    %298 = vmatprep.subr.mxu0 0.0
    %299 = vmatpush1.msra.mxu0 0.0
    %300 = vmatprep.subr.mxu0 0.0
    %301 = vmatpush1.msra.mxu0 0.0
    %302 = vmatprep.subr.mxu0 0.0
    %303 = vmatpush1.msra.mxu0 0.0
    %304 = vmatprep.subr.mxu0 0.0
    %305 = vmatpush1.msra.mxu0 0.0
    %306 = vmatprep.subr.mxu0 0.0
    %307 = vmatpush1.msra.mxu0 0.0
    %308 = vmatprep.subr.mxu0 0.0
    %309 = vmatpush1.msra.mxu0 0.0
    %310 = vmatprep.subr.mxu0 0.0
    %311 = vmatpush1.msra.mxu0 0.0
    %312 = vmatprep.subr.mxu0 0.0
    %313 = vmatpush1.msra.mxu0 0.0
    %314 = vmatprep.subr.mxu0 0.0
    %315 = vmatpush1.msra.mxu0 0.0
    %316 = vmatprep.subr.mxu0 0.0
    %317 = vmatpush1.msra.mxu0 0.0
    %318 = vmatprep.subr.mxu0 0.0
    %319 = vmatpush1.msra.mxu0 0.0
    %320 = vmatprep.subr.mxu0 0.0
    %321 = vmatpush1.msra.mxu0 0.0
    %322 = vmatprep.subr.mxu0 0.0
    %323 = vmatpush1.msra.mxu0 %v293
    %324 = vmatprep.subr.mxu0 0.0
    %325 = vmatpush1.msra.mxu0 %v292
    %326 = vmatprep.subr.mxu0 0.0
    %327 = vmatpush1.msra.mxu0 %v291
    %328 = vmatprep.subr.mxu0 0.0
    %329 = vmatpush1.msra.mxu0 %v290
    %330 = vmatprep.subr.mxu0 0.0
    %331 = vmatpush2.msra.mxu0 0.0
    %332 = vmatprep.subr.mxu0 0.0
    %333 = vmatpush2.msra.mxu0 0.0
    %334 = vmatprep.subr.mxu0 0.0
    %335 = vmatpush2.msra.mxu0 0.0
    %336 = vmatprep.subr.mxu0 0.0
    %337 = vmatpush2.msra.mxu0 0.0
    %338 = vmatprep.subr.mxu0 0.0
    %339 = vmatpush2.msra.mxu0 0.0
    %340 = vmatprep.subr.mxu0 0.0
    %341 = vmatpush2.msra.mxu0 0.0
    %342 = vmatprep.subr.mxu0 0.0
    %343 = vmatpush2.msra.mxu0 0.0
    %344 = vmatprep.subr.mxu0 0.0
    %345 = vmatpush2.msra.mxu0 0.0
    %346 = vmatprep.subr.mxu0 0.0
    %347 = vmatpush2.msra.mxu0 0.0
    %348 = vmatprep.subr.mxu0 0.0
    %349 = vmatpush2.msra.mxu0 0.0
    %350 = vmatprep.subr.mxu0 0.0
    %351 = vmatpush2.msra.mxu0 0.0
    %352 = vmatprep.subr.mxu0 0.0
    %353 = vmatpush2.msra.mxu0 0.0
    %354 = vmatprep.subr.mxu0 0.0
    %355 = vmatpush2.msra.mxu0 0.0
    %356 = vmatprep.subr.mxu0 0.0
    %357 = vmatpush2.msra.mxu0 0.0
    %358 = vmatprep.subr.mxu0 0.0
    %359 = vmatpush2.msra.mxu0 0.0
    %360 = vmatprep.subr.mxu0 0.0
    %361 = vmatpush2.msra.mxu0 0.0
    %362 = vmatprep.mubr.f32.mxu0 0.0
    %363 = vmatmul.mubr.f32.gmra.mxu0 %v296
    %v364 = vpop.f32.mrf.mxu0
    %v365 = vadd.f32 0.0, %v364
    %v366 = vpop.f32.mrf.mxu0
    %367 = vdwg.mxu0
    %v368 = vadd.f32 %v252, %v365
    %v369 = vxor.u32 %v368, 2147483648
    %v370 = vmul.f32 %v369, 1.442695
    %v371 = vpow.pop %v370
    %v372 = vadd.f32 %v371, 1.0
    %v373 = vrcp.pop %v372
    %v374 = vmul.f32 1.0, %v373
    %v375 = vtanh.pop %v368
    %v376 = vmul.f32 %v374, 0.0
    %378 = vrot.lane.b32.xlu0 %v375, 64
    %v379 = vpop.permute.xlu0 %378
    %v381 = vmul.f32 %v374, %v379
    %383 = vrot.lane.b32.xlu0 %v381, 32
    %v384 = vpop.permute.xlu0 %383
    %v386 = vadd.f32 %v376, %v384
    %v387 = vtanh.pop %v386
    %389 = vrot.lane.b32.xlu0 %v387, 64
    %v390 = vpop.permute.xlu0 %389
    %v392 = vmul.f32 %v374, %v390
    %394 = vrot.lane.b32.xlu0 %v392, 32
    %v395 = vpop.permute.xlu0 %394
    %v396 = vsel %vm294, %v395, 0
    %398 = vmatprep.subr.mxu0 0.0
    %399 = vmatpush1.msra.mxu0 0.0
    %400 = vmatprep.subr.mxu0 0.0
    %401 = vmatpush1.msra.mxu0 0.0
    %402 = vmatprep.subr.mxu0 0.0
    %403 = vmatpush1.msra.mxu0 0.0
    %404 = vmatprep.subr.mxu0 0.0
    %405 = vmatpush1.msra.mxu0 0.0
    %406 = vmatprep.subr.mxu0 0.0
    %407 = vmatpush1.msra.mxu0 0.0
    %408 = vmatprep.subr.mxu0 0.0
    %409 = vmatpush1.msra.mxu0 0.0
    %410 = vmatprep.subr.mxu0 0.0
    %411 = vmatpush1.msra.mxu0 0.0
    %412 = vmatprep.subr.mxu0 0.0
    %413 = vmatpush1.msra.mxu0 0.0
    %414 = vmatprep.subr.mxu0 0.0
    %415 = vmatpush1.msra.mxu0 0.0
    %416 = vmatprep.subr.mxu0 0.0
    %417 = vmatpush1.msra.mxu0 0.0
    %418 = vmatprep.subr.mxu0 0.0
    %419 = vmatpush1.msra.mxu0 0.0
    %420 = vmatprep.subr.mxu0 0.0
    %421 = vmatpush1.msra.mxu0 0.0
    %422 = vmatprep.subr.mxu0 0.0
    %423 = vmatpush1.msra.mxu0 %v293
    %424 = vmatprep.subr.mxu0 0.0
    %425 = vmatpush1.msra.mxu0 %v292
    %426 = vmatprep.subr.mxu0 0.0
    %427 = vmatpush1.msra.mxu0 %v291
    %428 = vmatprep.subr.mxu0 0.0
    %429 = vmatpush1.msra.mxu0 %v290
    %430 = vmatprep.subr.mxu0 0.0
    %431 = vmatpush2.msra.mxu0 0.0
    %432 = vmatprep.subr.mxu0 0.0
    %433 = vmatpush2.msra.mxu0 0.0
    %434 = vmatprep.subr.mxu0 0.0
    %435 = vmatpush2.msra.mxu0 0.0
    %436 = vmatprep.subr.mxu0 0.0
    %437 = vmatpush2.msra.mxu0 0.0
    %438 = vmatprep.subr.mxu0 0.0
    %439 = vmatpush2.msra.mxu0 0.0
    %440 = vmatprep.subr.mxu0 0.0
    %441 = vmatpush2.msra.mxu0 0.0
    %442 = vmatprep.subr.mxu0 0.0
    %443 = vmatpush2.msra.mxu0 0.0
    %444 = vmatprep.subr.mxu0 0.0
    %445 = vmatpush2.msra.mxu0 0.0
    %446 = vmatprep.subr.mxu0 0.0
    %447 = vmatpush2.msra.mxu0 0.0
    %448 = vmatprep.subr.mxu0 0.0
    %449 = vmatpush2.msra.mxu0 0.0
    %450 = vmatprep.subr.mxu0 0.0
    %451 = vmatpush2.msra.mxu0 0.0
    %452 = vmatprep.subr.mxu0 0.0
    %453 = vmatpush2.msra.mxu0 0.0
    %454 = vmatprep.subr.mxu0 0.0
    %455 = vmatpush2.msra.mxu0 0.0
    %456 = vmatprep.subr.mxu0 0.0
    %457 = vmatpush2.msra.mxu0 0.0
    %458 = vmatprep.subr.mxu0 0.0
    %459 = vmatpush2.msra.mxu0 0.0
    %460 = vmatprep.subr.mxu0 0.0
    %461 = vmatpush2.msra.mxu0 0.0
    %462 = vmatprep.mubr.f32.mxu0 0.0
    %463 = vmatmul.mubr.f32.gmra.mxu0 %v396
    %v464 = vpop.f32.mrf.mxu0
    %v465 = vadd.f32 0.0, %v464
    %v466 = vpop.f32.mrf.mxu0
    %467 = vdwg.mxu0
    %v468 = vadd.f32 %v257, %v465
    %v469 = vxor.u32 %v468, 2147483648
    %v470 = vmul.f32 %v469, 1.442695
    %v471 = vpow.pop %v470
    %v472 = vadd.f32 %v471, 1.0
    %v473 = vrcp.pop %v472
    %v474 = vmul.f32 1.0, %v473
    %v475 = vtanh.pop %v468
    %v476 = vmul.f32 %v474, %v386
    %478 = vrot.lane.b32.xlu0 %v475, 64
    %v479 = vpop.permute.xlu0 %478
    %v481 = vmul.f32 %v474, %v479
    %483 = vrot.lane.b32.xlu0 %v481, 32
    %v484 = vpop.permute.xlu0 %483
    %v486 = vadd.f32 %v476, %v484
    %v487 = vtanh.pop %v486
    %489 = vrot.lane.b32.xlu0 %v487, 64
    %v490 = vpop.permute.xlu0 %489
    %v492 = vmul.f32 %v474, %v490
    %494 = vrot.lane.b32.xlu0 %v492, 32
    %v495 = vpop.permute.xlu0 %494
    %v496 = vsel %vm294, %v495, 0
    %498 = vmatprep.subr.mxu0 0.0
    %499 = vmatpush1.msra.mxu0 0.0
    %500 = vmatprep.subr.mxu0 0.0
    %501 = vmatpush1.msra.mxu0 0.0
    %502 = vmatprep.subr.mxu0 0.0
    %503 = vmatpush1.msra.mxu0 0.0
    %504 = vmatprep.subr.mxu0 0.0
    %505 = vmatpush1.msra.mxu0 0.0
    %506 = vmatprep.subr.mxu0 0.0
    %507 = vmatpush1.msra.mxu0 0.0
    %508 = vmatprep.subr.mxu0 0.0
    %509 = vmatpush1.msra.mxu0 0.0
    %510 = vmatprep.subr.mxu0 0.0
    %511 = vmatpush1.msra.mxu0 0.0
    %512 = vmatprep.subr.mxu0 0.0
    %513 = vmatpush1.msra.mxu0 0.0
    %514 = vmatprep.subr.mxu0 0.0
    %515 = vmatpush1.msra.mxu0 0.0
    %516 = vmatprep.subr.mxu0 0.0
    %517 = vmatpush1.msra.mxu0 0.0
    %518 = vmatprep.subr.mxu0 0.0
    %519 = vmatpush1.msra.mxu0 0.0
    %520 = vmatprep.subr.mxu0 0.0
    %521 = vmatpush1.msra.mxu0 0.0
    %522 = vmatprep.subr.mxu0 0.0
    %523 = vmatpush1.msra.mxu0 %v293
    %524 = vmatprep.subr.mxu0 0.0
    %525 = vmatpush1.msra.mxu0 %v292
    %526 = vmatprep.subr.mxu0 0.0
    %527 = vmatpush1.msra.mxu0 %v291
    %528 = vmatprep.subr.mxu0 0.0
    %529 = vmatpush1.msra.mxu0 %v290
    %530 = vmatprep.subr.mxu0 0.0
    %531 = vmatpush2.msra.mxu0 0.0
    %532 = vmatprep.subr.mxu0 0.0
    %533 = vmatpush2.msra.mxu0 0.0
    %534 = vmatprep.subr.mxu0 0.0
    %535 = vmatpush2.msra.mxu0 0.0
    %536 = vmatprep.subr.mxu0 0.0
    %537 = vmatpush2.msra.mxu0 0.0
    %538 = vmatprep.subr.mxu0 0.0
    %539 = vmatpush2.msra.mxu0 0.0
    %540 = vmatprep.subr.mxu0 0.0
    %541 = vmatpush2.msra.mxu0 0.0
    %542 = vmatprep.subr.mxu0 0.0
    %543 = vmatpush2.msra.mxu0 0.0
    %544 = vmatprep.subr.mxu0 0.0
    %545 = vmatpush2.msra.mxu0 0.0
    %546 = vmatprep.subr.mxu0 0.0
    %547 = vmatpush2.msra.mxu0 0.0
    %548 = vmatprep.subr.mxu0 0.0
    %549 = vmatpush2.msra.mxu0 0.0
    %550 = vmatprep.subr.mxu0 0.0
    %551 = vmatpush2.msra.mxu0 0.0
    %552 = vmatprep.subr.mxu0 0.0
    %553 = vmatpush2.msra.mxu0 0.0
    %554 = vmatprep.subr.mxu0 0.0
    %555 = vmatpush2.msra.mxu0 0.0
    %556 = vmatprep.subr.mxu0 0.0
    %557 = vmatpush2.msra.mxu0 0.0
    %558 = vmatprep.subr.mxu0 0.0
    %559 = vmatpush2.msra.mxu0 0.0
    %560 = vmatprep.subr.mxu0 0.0
    %561 = vmatpush2.msra.mxu0 0.0
    %562 = vmatprep.mubr.f32.mxu0 0.0
    %563 = vmatmul.mubr.f32.gmra.mxu0 %v496
    %v564 = vpop.f32.mrf.mxu0
    %v565 = vadd.f32 0.0, %v564
    %v566 = vpop.f32.mrf.mxu0
    %567 = vdwg.mxu0
    %v568 = vadd.f32 %v262, %v565
    %v569 = vxor.u32 %v568, 2147483648
    %v570 = vmul.f32 %v569, 1.442695
    %v571 = vpow.pop %v570
    %v572 = vadd.f32 %v571, 1.0
    %v573 = vrcp.pop %v572
    %v574 = vmul.f32 1.0, %v573
    %v575 = vtanh.pop %v568
    %v576 = vmul.f32 %v574, %v486
    %578 = vrot.lane.b32.xlu0 %v575, 64
    %v579 = vpop.permute.xlu0 %578
    %v581 = vmul.f32 %v574, %v579
    %583 = vrot.lane.b32.xlu0 %v581, 32
    %v584 = vpop.permute.xlu0 %583
    %v586 = vadd.f32 %v576, %v584
    %v587 = vtanh.pop %v586
    %589 = vrot.lane.b32.xlu0 %v587, 64
    %v590 = vpop.permute.xlu0 %589
    %v592 = vmul.f32 %v574, %v590
    %594 = vrot.lane.b32.xlu0 %v592, 32
    %v595 = vpop.permute.xlu0 %594
    %v596 = vsel %vm294, %v595, 0
    %598 = vmatprep.subr.mxu0 0.0
    %599 = vmatpush1.msra.mxu0 0.0
    %600 = vmatprep.subr.mxu0 0.0
    %601 = vmatpush1.msra.mxu0 0.0
    %602 = vmatprep.subr.mxu0 0.0
    %603 = vmatpush1.msra.mxu0 0.0
    %604 = vmatprep.subr.mxu0 0.0
    %605 = vmatpush1.msra.mxu0 0.0
    %606 = vmatprep.subr.mxu0 0.0
    %607 = vmatpush1.msra.mxu0 0.0
    %608 = vmatprep.subr.mxu0 0.0
    %609 = vmatpush1.msra.mxu0 0.0
    %610 = vmatprep.subr.mxu0 0.0
    %611 = vmatpush1.msra.mxu0 0.0
    %612 = vmatprep.subr.mxu0 0.0
    %613 = vmatpush1.msra.mxu0 0.0
    %614 = vmatprep.subr.mxu0 0.0
    %615 = vmatpush1.msra.mxu0 0.0
    %616 = vmatprep.subr.mxu0 0.0
    %617 = vmatpush1.msra.mxu0 0.0
    %618 = vmatprep.subr.mxu0 0.0
    %619 = vmatpush1.msra.mxu0 0.0
    %620 = vmatprep.subr.mxu0 0.0
    %621 = vmatpush1.msra.mxu0 0.0
    %622 = vmatprep.subr.mxu0 0.0
    %623 = vmatpush1.msra.mxu0 %v293
    %624 = vmatprep.subr.mxu0 0.0
    %625 = vmatpush1.msra.mxu0 %v292
    %626 = vmatprep.subr.mxu0 0.0
    %627 = vmatpush1.msra.mxu0 %v291
    %628 = vmatprep.subr.mxu0 0.0
    %629 = vmatpush1.msra.mxu0 %v290
    %630 = vmatprep.subr.mxu0 0.0
    %631 = vmatpush2.msra.mxu0 0.0
    %632 = vmatprep.subr.mxu0 0.0
    %633 = vmatpush2.msra.mxu0 0.0
    %634 = vmatprep.subr.mxu0 0.0
    %635 = vmatpush2.msra.mxu0 0.0
    %636 = vmatprep.subr.mxu0 0.0
    %637 = vmatpush2.msra.mxu0 0.0
    %638 = vmatprep.subr.mxu0 0.0
    %639 = vmatpush2.msra.mxu0 0.0
    %640 = vmatprep.subr.mxu0 0.0
    %641 = vmatpush2.msra.mxu0 0.0
    %642 = vmatprep.subr.mxu0 0.0
    %643 = vmatpush2.msra.mxu0 0.0
    %644 = vmatprep.subr.mxu0 0.0
    %645 = vmatpush2.msra.mxu0 0.0
    %646 = vmatprep.subr.mxu0 0.0
    %647 = vmatpush2.msra.mxu0 0.0
    %648 = vmatprep.subr.mxu0 0.0
    %649 = vmatpush2.msra.mxu0 0.0
    %650 = vmatprep.subr.mxu0 0.0
    %651 = vmatpush2.msra.mxu0 0.0
    %652 = vmatprep.subr.mxu0 0.0
    %653 = vmatpush2.msra.mxu0 0.0
    %654 = vmatprep.subr.mxu0 0.0
    %655 = vmatpush2.msra.mxu0 0.0
    %656 = vmatprep.subr.mxu0 0.0
    %657 = vmatpush2.msra.mxu0 0.0
    %658 = vmatprep.subr.mxu0 0.0
    %659 = vmatpush2.msra.mxu0 0.0
    %660 = vmatprep.subr.mxu0 0.0
    %661 = vmatpush2.msra.mxu0 0.0
    %662 = vmatprep.mubr.f32.mxu0 0.0
    %663 = vmatmul.mubr.f32.gmra.mxu0 %v596
    %v664 = vpop.f32.mrf.mxu0
    %v665 = vadd.f32 0.0, %v664
    %v666 = vpop.f32.mrf.mxu0
    %667 = vdwg.mxu0
    %v668 = vadd.f32 %v267, %v665
    %v669 = vxor.u32 %v668, 2147483648
    %v670 = vmul.f32 %v669, 1.442695
    %v671 = vpow.pop %v670
    %v672 = vadd.f32 %v671, 1.0
    %v673 = vrcp.pop %v672
    %v674 = vmul.f32 1.0, %v673
    %v675 = vtanh.pop %v668
    %v676 = vmul.f32 %v674, %v586
    %678 = vrot.lane.b32.xlu0 %v675, 64
    %v679 = vpop.permute.xlu0 %678
    %v681 = vmul.f32 %v674, %v679
    %683 = vrot.lane.b32.xlu0 %v681, 32
    %v684 = vpop.permute.xlu0 %683
    %v686 = vadd.f32 %v676, %v684
    %v687 = vtanh.pop %v686
    %689 = vrot.lane.b32.xlu0 %v687, 64
    %v690 = vpop.permute.xlu0 %689
    %v692 = vmul.f32 %v674, %v690
    %694 = vrot.lane.b32.xlu0 %v692, 32
    %v695 = vpop.permute.xlu0 %694
    %v696 = vsel %vm294, %v695, 0
    %698 = vmatprep.subr.mxu0 0.0
    %699 = vmatpush1.msra.mxu0 0.0
    %700 = vmatprep.subr.mxu0 0.0
    %701 = vmatpush1.msra.mxu0 0.0
    %702 = vmatprep.subr.mxu0 0.0
    %703 = vmatpush1.msra.mxu0 0.0
    %704 = vmatprep.subr.mxu0 0.0
    %705 = vmatpush1.msra.mxu0 0.0
    %706 = vmatprep.subr.mxu0 0.0
    %707 = vmatpush1.msra.mxu0 0.0
    %708 = vmatprep.subr.mxu0 0.0
    %709 = vmatpush1.msra.mxu0 0.0
    %710 = vmatprep.subr.mxu0 0.0
    %711 = vmatpush1.msra.mxu0 0.0
    %712 = vmatprep.subr.mxu0 0.0
    %713 = vmatpush1.msra.mxu0 0.0
    %714 = vmatprep.subr.mxu0 0.0
    %715 = vmatpush1.msra.mxu0 0.0
    %716 = vmatprep.subr.mxu0 0.0
    %717 = vmatpush1.msra.mxu0 0.0
    %718 = vmatprep.subr.mxu0 0.0
    %719 = vmatpush1.msra.mxu0 0.0
    %720 = vmatprep.subr.mxu0 0.0
    %721 = vmatpush1.msra.mxu0 0.0
    %722 = vmatprep.subr.mxu0 0.0
    %723 = vmatpush1.msra.mxu0 %v293
    %724 = vmatprep.subr.mxu0 0.0
    %725 = vmatpush1.msra.mxu0 %v292
    %726 = vmatprep.subr.mxu0 0.0
    %727 = vmatpush1.msra.mxu0 %v291
    %728 = vmatprep.subr.mxu0 0.0
    %729 = vmatpush1.msra.mxu0 %v290
    %730 = vmatprep.subr.mxu0 0.0
    %731 = vmatpush2.msra.mxu0 0.0
    %732 = vmatprep.subr.mxu0 0.0
    %733 = vmatpush2.msra.mxu0 0.0
    %734 = vmatprep.subr.mxu0 0.0
    %735 = vmatpush2.msra.mxu0 0.0
    %736 = vmatprep.subr.mxu0 0.0
    %737 = vmatpush2.msra.mxu0 0.0
    %738 = vmatprep.subr.mxu0 0.0
    %739 = vmatpush2.msra.mxu0 0.0
    %740 = vmatprep.subr.mxu0 0.0
    %741 = vmatpush2.msra.mxu0 0.0
    %742 = vmatprep.subr.mxu0 0.0
    %743 = vmatpush2.msra.mxu0 0.0
    %744 = vmatprep.subr.mxu0 0.0
    %745 = vmatpush2.msra.mxu0 0.0
    %746 = vmatprep.subr.mxu0 0.0
    %747 = vmatpush2.msra.mxu0 0.0
    %748 = vmatprep.subr.mxu0 0.0
    %749 = vmatpush2.msra.mxu0 0.0
    %750 = vmatprep.subr.mxu0 0.0
    %751 = vmatpush2.msra.mxu0 0.0
    %752 = vmatprep.subr.mxu0 0.0
    %753 = vmatpush2.msra.mxu0 0.0
    %754 = vmatprep.subr.mxu0 0.0
    %755 = vmatpush2.msra.mxu0 0.0
    %756 = vmatprep.subr.mxu0 0.0
    %757 = vmatpush2.msra.mxu0 0.0
    %758 = vmatprep.subr.mxu0 0.0
    %759 = vmatpush2.msra.mxu0 0.0
    %760 = vmatprep.subr.mxu0 0.0
    %761 = vmatpush2.msra.mxu0 0.0
    %762 = vmatprep.mubr.f32.mxu0 0.0
    %763 = vmatmul.mubr.f32.gmra.mxu0 %v696
    %v764 = vpop.f32.mrf.mxu0
    %v765 = vadd.f32 0.0, %v764
    %v766 = vpop.f32.mrf.mxu0
    %767 = vdwg.mxu0
    %v768 = vadd.f32 %v272, %v765
    %v769 = vxor.u32 %v768, 2147483648
    %v770 = vmul.f32 %v769, 1.442695
    %v771 = vpow.pop %v770
    %v772 = vadd.f32 %v771, 1.0
    %v773 = vrcp.pop %v772
    %v774 = vmul.f32 1.0, %v773
    %v775 = vtanh.pop %v768
    %v776 = vmul.f32 %v774, %v686
    %778 = vrot.lane.b32.xlu0 %v775, 64
    %v779 = vpop.permute.xlu0 %778
    %v781 = vmul.f32 %v774, %v779
    %783 = vrot.lane.b32.xlu0 %v781, 32
    %v784 = vpop.permute.xlu0 %783
    %v786 = vadd.f32 %v776, %v784
    %v787 = vtanh.pop %v786
    %789 = vrot.lane.b32.xlu0 %v787, 64
    %v790 = vpop.permute.xlu0 %789
    %v792 = vmul.f32 %v774, %v790
    %794 = vrot.lane.b32.xlu0 %v792, 32
    %v795 = vpop.permute.xlu0 %794
    %v796 = vsel %vm294, %v795, 0
    %798 = vmatprep.subr.mxu0 0.0
    %799 = vmatpush1.msra.mxu0 0.0
    %800 = vmatprep.subr.mxu0 0.0
    %801 = vmatpush1.msra.mxu0 0.0
    %802 = vmatprep.subr.mxu0 0.0
    %803 = vmatpush1.msra.mxu0 0.0
    %804 = vmatprep.subr.mxu0 0.0
    %805 = vmatpush1.msra.mxu0 0.0
    %806 = vmatprep.subr.mxu0 0.0
    %807 = vmatpush1.msra.mxu0 0.0
    %808 = vmatprep.subr.mxu0 0.0
    %809 = vmatpush1.msra.mxu0 0.0
    %810 = vmatprep.subr.mxu0 0.0
    %811 = vmatpush1.msra.mxu0 0.0
    %812 = vmatprep.subr.mxu0 0.0
    %813 = vmatpush1.msra.mxu0 0.0
    %814 = vmatprep.subr.mxu0 0.0
    %815 = vmatpush1.msra.mxu0 0.0
    %816 = vmatprep.subr.mxu0 0.0
    %817 = vmatpush1.msra.mxu0 0.0
    %818 = vmatprep.subr.mxu0 0.0
    %819 = vmatpush1.msra.mxu0 0.0
    %820 = vmatprep.subr.mxu0 0.0
    %821 = vmatpush1.msra.mxu0 0.0
    %822 = vmatprep.subr.mxu0 0.0
    %823 = vmatpush1.msra.mxu0 %v293
    %824 = vmatprep.subr.mxu0 0.0
    %825 = vmatpush1.msra.mxu0 %v292
    %826 = vmatprep.subr.mxu0 0.0
    %827 = vmatpush1.msra.mxu0 %v291
    %828 = vmatprep.subr.mxu0 0.0
    %829 = vmatpush1.msra.mxu0 %v290
    %830 = vmatprep.subr.mxu0 0.0
    %831 = vmatpush2.msra.mxu0 0.0
    %832 = vmatprep.subr.mxu0 0.0
    %833 = vmatpush2.msra.mxu0 0.0
    %834 = vmatprep.subr.mxu0 0.0
    %835 = vmatpush2.msra.mxu0 0.0
    %836 = vmatprep.subr.mxu0 0.0
    %837 = vmatpush2.msra.mxu0 0.0
    %838 = vmatprep.subr.mxu0 0.0
    %839 = vmatpush2.msra.mxu0 0.0
    %840 = vmatprep.subr.mxu0 0.0
    %841 = vmatpush2.msra.mxu0 0.0
    %842 = vmatprep.subr.mxu0 0.0
    %843 = vmatpush2.msra.mxu0 0.0
    %844 = vmatprep.subr.mxu0 0.0
    %845 = vmatpush2.msra.mxu0 0.0
    %846 = vmatprep.subr.mxu0 0.0
    %847 = vmatpush2.msra.mxu0 0.0
    %848 = vmatprep.subr.mxu0 0.0
    %849 = vmatpush2.msra.mxu0 0.0
    %850 = vmatprep.subr.mxu0 0.0
    %851 = vmatpush2.msra.mxu0 0.0
    %852 = vmatprep.subr.mxu0 0.0
    %853 = vmatpush2.msra.mxu0 0.0
    %854 = vmatprep.subr.mxu0 0.0
    %855 = vmatpush2.msra.mxu0 0.0
    %856 = vmatprep.subr.mxu0 0.0
    %857 = vmatpush2.msra.mxu0 0.0
    %858 = vmatprep.subr.mxu0 0.0
    %859 = vmatpush2.msra.mxu0 0.0
    %860 = vmatprep.subr.mxu0 0.0
    %861 = vmatpush2.msra.mxu0 0.0
    %862 = vmatprep.mubr.f32.mxu0 0.0
    %863 = vmatmul.mubr.f32.gmra.mxu0 %v796
    %v864 = vpop.f32.mrf.mxu0
    %v865 = vadd.f32 0.0, %v864
    %v866 = vpop.f32.mrf.mxu0
    %867 = vdwg.mxu0
    %v868 = vadd.f32 %v277, %v865
    %v869 = vxor.u32 %v868, 2147483648
    %v870 = vmul.f32 %v869, 1.442695
    %v871 = vpow.pop %v870
    %v872 = vadd.f32 %v871, 1.0
    %v873 = vrcp.pop %v872
    %v874 = vmul.f32 1.0, %v873
    %v875 = vtanh.pop %v868
    %v876 = vmul.f32 %v874, %v786
    %878 = vrot.lane.b32.xlu0 %v875, 64
    %v879 = vpop.permute.xlu0 %878
    %v881 = vmul.f32 %v874, %v879
    %883 = vrot.lane.b32.xlu0 %v881, 32
    %v884 = vpop.permute.xlu0 %883
    %v886 = vadd.f32 %v876, %v884
    %v887 = vtanh.pop %v886
    %889 = vrot.lane.b32.xlu0 %v887, 64
    %v890 = vpop.permute.xlu0 %889
    %v892 = vmul.f32 %v874, %v890
    %894 = vrot.lane.b32.xlu0 %v892, 32
    %v895 = vpop.permute.xlu0 %894
    %v896 = vsel %vm294, %v895, 0
    %898 = vmatprep.subr.mxu0 0.0
    %899 = vmatpush1.msra.mxu0 0.0
    %900 = vmatprep.subr.mxu0 0.0
    %901 = vmatpush1.msra.mxu0 0.0
    %902 = vmatprep.subr.mxu0 0.0
    %903 = vmatpush1.msra.mxu0 0.0
    %904 = vmatprep.subr.mxu0 0.0
    %905 = vmatpush1.msra.mxu0 0.0
    %906 = vmatprep.subr.mxu0 0.0
    %907 = vmatpush1.msra.mxu0 0.0
    %908 = vmatprep.subr.mxu0 0.0
    %909 = vmatpush1.msra.mxu0 0.0
    %910 = vmatprep.subr.mxu0 0.0
    %911 = vmatpush1.msra.mxu0 0.0
    %912 = vmatprep.subr.mxu0 0.0
    %913 = vmatpush1.msra.mxu0 0.0
    %914 = vmatprep.subr.mxu0 0.0
    %915 = vmatpush1.msra.mxu0 0.0
    %916 = vmatprep.subr.mxu0 0.0
    %917 = vmatpush1.msra.mxu0 0.0
    %918 = vmatprep.subr.mxu0 0.0
    %919 = vmatpush1.msra.mxu0 0.0
    %920 = vmatprep.subr.mxu0 0.0
    %921 = vmatpush1.msra.mxu0 0.0
    %922 = vmatprep.subr.mxu0 0.0
    %923 = vmatpush1.msra.mxu0 %v293
    %924 = vmatprep.subr.mxu0 0.0
    %925 = vmatpush1.msra.mxu0 %v292
    %926 = vmatprep.subr.mxu0 0.0
    %927 = vmatpush1.msra.mxu0 %v291
    %928 = vmatprep.subr.mxu0 0.0
    %929 = vmatpush1.msra.mxu0 %v290
    %930 = vmatprep.subr.mxu0 0.0
    %931 = vmatpush2.msra.mxu0 0.0
    %932 = vmatprep.subr.mxu0 0.0
    %933 = vmatpush2.msra.mxu0 0.0
    %934 = vmatprep.subr.mxu0 0.0
    %935 = vmatpush2.msra.mxu0 0.0
    %936 = vmatprep.subr.mxu0 0.0
    %937 = vmatpush2.msra.mxu0 0.0
    %938 = vmatprep.subr.mxu0 0.0
    %939 = vmatpush2.msra.mxu0 0.0
    %940 = vmatprep.subr.mxu0 0.0
    %941 = vmatpush2.msra.mxu0 0.0
    %942 = vmatprep.subr.mxu0 0.0
    %943 = vmatpush2.msra.mxu0 0.0
    %944 = vmatprep.subr.mxu0 0.0
    %945 = vmatpush2.msra.mxu0 0.0
    %946 = vmatprep.subr.mxu0 0.0
    %947 = vmatpush2.msra.mxu0 0.0
    %948 = vmatprep.subr.mxu0 0.0
    %949 = vmatpush2.msra.mxu0 0.0
    %950 = vmatprep.subr.mxu0 0.0
    %951 = vmatpush2.msra.mxu0 0.0
    %952 = vmatprep.subr.mxu0 0.0
    %953 = vmatpush2.msra.mxu0 0.0
    %954 = vmatprep.subr.mxu0 0.0
    %955 = vmatpush2.msra.mxu0 0.0
    %956 = vmatprep.subr.mxu0 0.0
    %957 = vmatpush2.msra.mxu0 0.0
    %958 = vmatprep.subr.mxu0 0.0
    %959 = vmatpush2.msra.mxu0 0.0
    %960 = vmatprep.subr.mxu0 0.0
    %961 = vmatpush2.msra.mxu0 0.0
    %962 = vmatprep.mubr.f32.mxu0 0.0
    %963 = vmatmul.mubr.f32.gmra.mxu0 %v896
    %v964 = vpop.f32.mrf.mxu0
    %v965 = vadd.f32 0.0, %v964
    %v966 = vpop.f32.mrf.mxu0
    %967 = vdwg.mxu0
    %v968 = vadd.f32 %v282, %v965
    %v969 = vxor.u32 %v968, 2147483648
    %v970 = vmul.f32 %v969, 1.442695
    %v971 = vpow.pop %v970
    %v972 = vadd.f32 %v971, 1.0
    %v973 = vrcp.pop %v972
    %v974 = vmul.f32 1.0, %v973
    %v975 = vtanh.pop %v968
    %v976 = vmul.f32 %v974, %v886
    %978 = vrot.lane.b32.xlu0 %v975, 64
    %v979 = vpop.permute.xlu0 %978
    %v981 = vmul.f32 %v974, %v979
    %983 = vrot.lane.b32.xlu0 %v981, 32
    %v984 = vpop.permute.xlu0 %983
    %v986 = vadd.f32 %v976, %v984
    %v987 = vtanh.pop %v986
    %989 = vrot.lane.b32.xlu0 %v987, 64
    %v990 = vpop.permute.xlu0 %989
    %v992 = vmul.f32 %v974, %v990
    %994 = vrot.lane.b32.xlu0 %v992, 32
    %v995 = vpop.permute.xlu0 %994
    %v996 = vsel %vm294, %v995, 0
    %998 = vmatprep.subr.mxu0 0.0
    %999 = vmatpush1.msra.mxu0 0.0
    %1000 = vmatprep.subr.mxu0 0.0
    %1001 = vmatpush1.msra.mxu0 0.0
    %1002 = vmatprep.subr.mxu0 0.0
    %1003 = vmatpush1.msra.mxu0 0.0
    %1004 = vmatprep.subr.mxu0 0.0
    %1005 = vmatpush1.msra.mxu0 0.0
    %1006 = vmatprep.subr.mxu0 0.0
    %1007 = vmatpush1.msra.mxu0 0.0
    %1008 = vmatprep.subr.mxu0 0.0
    %1009 = vmatpush1.msra.mxu0 0.0
    %1010 = vmatprep.subr.mxu0 0.0
    %1011 = vmatpush1.msra.mxu0 0.0
    %1012 = vmatprep.subr.mxu0 0.0
    %1013 = vmatpush1.msra.mxu0 0.0
    %1014 = vmatprep.subr.mxu0 0.0
    %1015 = vmatpush1.msra.mxu0 0.0
    %1016 = vmatprep.subr.mxu0 0.0
    %1017 = vmatpush1.msra.mxu0 0.0
    %1018 = vmatprep.subr.mxu0 0.0
    %1019 = vmatpush1.msra.mxu0 0.0
    %1020 = vmatprep.subr.mxu0 0.0
    %1021 = vmatpush1.msra.mxu0 0.0
    %1022 = vmatprep.subr.mxu0 0.0
    %1023 = vmatpush1.msra.mxu0 %v293
    %1024 = vmatprep.subr.mxu0 0.0
    %1025 = vmatpush1.msra.mxu0 %v292
    %1026 = vmatprep.subr.mxu0 0.0
    %1027 = vmatpush1.msra.mxu0 %v291
    %1028 = vmatprep.subr.mxu0 0.0
    %1029 = vmatpush1.msra.mxu0 %v290
    %1030 = vmatprep.subr.mxu0 0.0
    %1031 = vmatpush2.msra.mxu0 0.0
    %1032 = vmatprep.subr.mxu0 0.0
    %1033 = vmatpush2.msra.mxu0 0.0
    %1034 = vmatprep.subr.mxu0 0.0
    %1035 = vmatpush2.msra.mxu0 0.0
    %1036 = vmatprep.subr.mxu0 0.0
    %1037 = vmatpush2.msra.mxu0 0.0
    %1038 = vmatprep.subr.mxu0 0.0
    %1039 = vmatpush2.msra.mxu0 0.0
    %1040 = vmatprep.subr.mxu0 0.0
    %1041 = vmatpush2.msra.mxu0 0.0
    %1042 = vmatprep.subr.mxu0 0.0
    %1043 = vmatpush2.msra.mxu0 0.0
    %1044 = vmatprep.subr.mxu0 0.0
    %1045 = vmatpush2.msra.mxu0 0.0
    %1046 = vmatprep.subr.mxu0 0.0
    %1047 = vmatpush2.msra.mxu0 0.0
    %1048 = vmatprep.subr.mxu0 0.0
    %1049 = vmatpush2.msra.mxu0 0.0
    %1050 = vmatprep.subr.mxu0 0.0
    %1051 = vmatpush2.msra.mxu0 0.0
    %1052 = vmatprep.subr.mxu0 0.0
    %1053 = vmatpush2.msra.mxu0 0.0
    %1054 = vmatprep.subr.mxu0 0.0
    %1055 = vmatpush2.msra.mxu0 0.0
    %1056 = vmatprep.subr.mxu0 0.0
    %1057 = vmatpush2.msra.mxu0 0.0
    %1058 = vmatprep.subr.mxu0 0.0
    %1059 = vmatpush2.msra.mxu0 0.0
    %1060 = vmatprep.subr.mxu0 0.0
    %1061 = vmatpush2.msra.mxu0 0.0
    %1062 = vmatprep.mubr.f32.mxu0 0.0
    %1063 = vmatmul.mubr.f32.gmra.mxu0 %v996
    %v1064 = vpop.f32.mrf.mxu0
    %v1065 = vadd.f32 0.0, %v1064
    %v1066 = vpop.f32.mrf.mxu0
    %1067 = vdwg.mxu0
    %v1068 = vadd.f32 %v287, %v1065
    %v1069 = vxor.u32 %v1068, 2147483648
    %v1070 = vmul.f32 %v1069, 1.442695
    %v1071 = vpow.pop %v1070
    %v1072 = vadd.f32 %v1071, 1.0
    %v1073 = vrcp.pop %v1072
    %v1074 = vmul.f32 1.0, %v1073
    %v1075 = vtanh.pop %v1068
    %v1076 = vmul.f32 %v1074, %v986
    %1078 = vrot.lane.b32.xlu0 %v1075, 64
    %v1079 = vpop.permute.xlu0 %1078
    %v1081 = vmul.f32 %v1074, %v1079
    %1083 = vrot.lane.b32.xlu0 %v1081, 32
    %v1084 = vpop.permute.xlu0 %1083
    %v1086 = vadd.f32 %v1076, %v1084
    %v1087 = vtanh.pop %v1086
    %1089 = vrot.lane.b32.xlu0 %v1087, 64
    %v1090 = vpop.permute.xlu0 %1089
    %v1092 = vmul.f32 %v1074, %v1090
    %v1093 = vld [vmem:[#allocation8] sm:$0xff]
    %v1094 = vld [vmem:[#allocation8 + $0x8] sm:$0xff]
    %v1095 = vld [vmem:[#allocation8 + $0x10] sm:$0xff]
    %v1096 = vld [vmem:[#allocation8 + $0x18] sm:$0xff]
    %v1097 = vld [vmem:[#allocation11] sm:$0x1]
    %v1099 = vlaneseq
    %v1100 = vshrl.u32 %v1099, 7
    %v1101 = vsub.s32 0, %v1100
    %v1102 = vrot.slane %v1097, %v1101
    %1105 = vrot.lane.b32.xlu0 %v1092, 32
    %v1106 = vpop.permute.xlu0 %1105
    %v1107 = vsel %vm294, %v1106, 0
    %1109 = vmatprep.subr.mxu0 0.0
    %1110 = vmatpush1.msra.mxu0 0.0
    %1111 = vmatprep.subr.mxu0 0.0
    %1112 = vmatpush1.msra.mxu0 0.0
    %1113 = vmatprep.subr.mxu0 0.0
    %1114 = vmatpush1.msra.mxu0 0.0
    %1115 = vmatprep.subr.mxu0 0.0
    %1116 = vmatpush1.msra.mxu0 0.0
    %1117 = vmatprep.subr.mxu0 0.0
    %1118 = vmatpush1.msra.mxu0 0.0
    %1119 = vmatprep.subr.mxu0 0.0
    %1120 = vmatpush1.msra.mxu0 0.0
    %1121 = vmatprep.subr.mxu0 0.0
    %1122 = vmatpush1.msra.mxu0 0.0
    %1123 = vmatprep.subr.mxu0 0.0
    %1124 = vmatpush1.msra.mxu0 0.0
    %1125 = vmatprep.subr.mxu0 0.0
    %1126 = vmatpush1.msra.mxu0 0.0
    %1127 = vmatprep.subr.mxu0 0.0
    %1128 = vmatpush1.msra.mxu0 0.0
    %1129 = vmatprep.subr.mxu0 0.0
    %1130 = vmatpush1.msra.mxu0 0.0
    %1131 = vmatprep.subr.mxu0 0.0
    %1132 = vmatpush1.msra.mxu0 0.0
    %1133 = vmatprep.subr.mxu0 0.0
    %1134 = vmatpush1.msra.mxu0 %v1096
    %1135 = vmatprep.subr.mxu0 0.0
    %1136 = vmatpush1.msra.mxu0 %v1095
    %1137 = vmatprep.subr.mxu0 0.0
    %1138 = vmatpush1.msra.mxu0 %v1094
    %1139 = vmatprep.subr.mxu0 0.0
    %1140 = vmatpush1.msra.mxu0 %v1093
    %1141 = vmatprep.subr.mxu0 0.0
    %1142 = vmatpush2.msra.mxu0 0.0
    %1143 = vmatprep.subr.mxu0 0.0
    %1144 = vmatpush2.msra.mxu0 0.0
    %1145 = vmatprep.subr.mxu0 0.0
    %1146 = vmatpush2.msra.mxu0 0.0
    %1147 = vmatprep.subr.mxu0 0.0
    %1148 = vmatpush2.msra.mxu0 0.0
    %1149 = vmatprep.subr.mxu0 0.0
    %1150 = vmatpush2.msra.mxu0 0.0
    %1151 = vmatprep.subr.mxu0 0.0
    %1152 = vmatpush2.msra.mxu0 0.0
    %1153 = vmatprep.subr.mxu0 0.0
    %1154 = vmatpush2.msra.mxu0 0.0
    %1155 = vmatprep.subr.mxu0 0.0
    %1156 = vmatpush2.msra.mxu0 0.0
    %1157 = vmatprep.subr.mxu0 0.0
    %1158 = vmatpush2.msra.mxu0 0.0
    %1159 = vmatprep.subr.mxu0 0.0
    %1160 = vmatpush2.msra.mxu0 0.0
    %1161 = vmatprep.subr.mxu0 0.0
    %1162 = vmatpush2.msra.mxu0 0.0
    %1163 = vmatprep.subr.mxu0 0.0
    %1164 = vmatpush2.msra.mxu0 0.0
    %1165 = vmatprep.subr.mxu0 0.0
    %1166 = vmatpush2.msra.mxu0 0.0
    %1167 = vmatprep.subr.mxu0 0.0
    %1168 = vmatpush2.msra.mxu0 0.0
    %1169 = vmatprep.subr.mxu0 0.0
    %1170 = vmatpush2.msra.mxu0 0.0
    %1171 = vmatprep.subr.mxu0 0.0
    %1172 = vmatpush2.msra.mxu0 0.0
    %1173 = vmatprep.mubr.f32.mxu0 0.0
    %1174 = vmatmul.mubr.f32.gmra.mxu0 %v396
    %v1175 = vpop.f32.mrf.mxu0
    %v1176 = vadd.f32 %v1102, %v1175
    %v1177 = vpop.f32.mrf.mxu0
    %1178 = vmatprep.mubr.f32.mxu0 0.0
    %1179 = vmatmul.mubr.f32.gmra.mxu0 %v496
    %v1180 = vpop.f32.mrf.mxu0
    %v1181 = vadd.f32 %v1102, %v1180
    %v1182 = vpop.f32.mrf.mxu0
    %1183 = vmatprep.mubr.f32.mxu0 0.0
    %1184 = vmatmul.mubr.f32.gmra.mxu0 %v596
    %v1185 = vpop.f32.mrf.mxu0
    %v1186 = vadd.f32 %v1102, %v1185
    %v1187 = vpop.f32.mrf.mxu0
    %1188 = vmatprep.mubr.f32.mxu0 0.0
    %1189 = vmatmul.mubr.f32.gmra.mxu0 %v696
    %v1190 = vpop.f32.mrf.mxu0
    %v1191 = vadd.f32 %v1102, %v1190
    %v1192 = vpop.f32.mrf.mxu0
    %1193 = vmatprep.mubr.f32.mxu0 0.0
    %1194 = vmatmul.mubr.f32.gmra.mxu0 %v796
    %v1195 = vpop.f32.mrf.mxu0
    %v1196 = vadd.f32 %v1102, %v1195
    %v1197 = vpop.f32.mrf.mxu0
    %1198 = vmatprep.mubr.f32.mxu0 0.0
    %1199 = vmatmul.mubr.f32.gmra.mxu0 %v896
    %v1200 = vpop.f32.mrf.mxu0
    %v1201 = vadd.f32 %v1102, %v1200
    %v1202 = vpop.f32.mrf.mxu0
    %1203 = vmatprep.mubr.f32.mxu0 0.0
    %1204 = vmatmul.mubr.f32.gmra.mxu0 %v996
    %v1205 = vpop.f32.mrf.mxu0
    %v1206 = vadd.f32 %v1102, %v1205
    %v1207 = vpop.f32.mrf.mxu0
    %1208 = vmatprep.mubr.f32.mxu0 0.0
    %1209 = vmatmul.mubr.f32.gmra.mxu0 %v1107
    %v1210 = vpop.f32.mrf.mxu0
    %v1211 = vadd.f32 %v1102, %v1210
    %v1212 = vpop.f32.mrf.mxu0
    %1213 = vdwg.mxu0
    %v1214 = vld [vmem:[#allocation10] sm:$0xff]
    %v1215 = vld [vmem:[#allocation10 + $0x8] sm:$0xff]
    %v1216 = vld [vmem:[#allocation10 + $0x10] sm:$0xff]
    %v1217 = vld [vmem:[#allocation10 + $0x18] sm:$0xff]
    %1218 = vmatprep.subr.mxu0 0.0
    %1219 = vmatpush1.msra.mxu0 0.0
    %1220 = vmatprep.subr.mxu0 0.0
    %1221 = vmatpush1.msra.mxu0 0.0
    %1222 = vmatprep.subr.mxu0 0.0
    %1223 = vmatpush1.msra.mxu0 0.0
    %1224 = vmatprep.subr.mxu0 0.0
    %1225 = vmatpush1.msra.mxu0 0.0
    %1226 = vmatprep.subr.mxu0 0.0
    %1227 = vmatpush1.msra.mxu0 0.0
    %1228 = vmatprep.subr.mxu0 0.0
    %1229 = vmatpush1.msra.mxu0 0.0
    %1230 = vmatprep.subr.mxu0 0.0
    %1231 = vmatpush1.msra.mxu0 0.0
    %1232 = vmatprep.subr.mxu0 0.0
    %1233 = vmatpush1.msra.mxu0 0.0
    %1234 = vmatprep.subr.mxu0 0.0
    %1235 = vmatpush1.msra.mxu0 0.0
    %1236 = vmatprep.subr.mxu0 0.0
    %1237 = vmatpush1.msra.mxu0 0.0
    %1238 = vmatprep.subr.mxu0 0.0
    %1239 = vmatpush1.msra.mxu0 0.0
    %1240 = vmatprep.subr.mxu0 0.0
    %1241 = vmatpush1.msra.mxu0 0.0
    %1242 = vmatprep.subr.mxu0 0.0
    %1243 = vmatpush1.msra.mxu0 %v1217
    %1244 = vmatprep.subr.mxu0 0.0
    %1245 = vmatpush1.msra.mxu0 %v1216
    %1246 = vmatprep.subr.mxu0 0.0
    %1247 = vmatpush1.msra.mxu0 %v1215
    %1248 = vmatprep.subr.mxu0 0.0
    %1249 = vmatpush1.msra.mxu0 %v1214
    %1250 = vmatprep.subr.mxu0 0.0
    %1251 = vmatpush2.msra.mxu0 0.0
    %1252 = vmatprep.subr.mxu0 0.0
    %1253 = vmatpush2.msra.mxu0 0.0
    %1254 = vmatprep.subr.mxu0 0.0
    %1255 = vmatpush2.msra.mxu0 0.0
    %1256 = vmatprep.subr.mxu0 0.0
    %1257 = vmatpush2.msra.mxu0 0.0
    %1258 = vmatprep.subr.mxu0 0.0
    %1259 = vmatpush2.msra.mxu0 0.0
    %1260 = vmatprep.subr.mxu0 0.0
    %1261 = vmatpush2.msra.mxu0 0.0
    %1262 = vmatprep.subr.mxu0 0.0
    %1263 = vmatpush2.msra.mxu0 0.0
    %1264 = vmatprep.subr.mxu0 0.0
    %1265 = vmatpush2.msra.mxu0 0.0
    %1266 = vmatprep.subr.mxu0 0.0
    %1267 = vmatpush2.msra.mxu0 0.0
    %1268 = vmatprep.subr.mxu0 0.0
    %1269 = vmatpush2.msra.mxu0 0.0
    %1270 = vmatprep.subr.mxu0 0.0
    %1271 = vmatpush2.msra.mxu0 0.0
    %1272 = vmatprep.subr.mxu0 0.0
    %1273 = vmatpush2.msra.mxu0 0.0
    %1274 = vmatprep.subr.mxu0 0.0
    %1275 = vmatpush2.msra.mxu0 0.0
    %1276 = vmatprep.subr.mxu0 0.0
    %1277 = vmatpush2.msra.mxu0 0.0
    %1278 = vmatprep.subr.mxu0 0.0
    %1279 = vmatpush2.msra.mxu0 0.0
    %1280 = vmatprep.subr.mxu0 0.0
    %1281 = vmatpush2.msra.mxu0 0.0
    %1282 = vmatprep.mubr.f32.mxu0 0.0
    %1283 = vmatmul.mubr.f32.gmra.mxu0 %v296
    %v1284 = vpop.f32.mrf.mxu0
    %v1285 = vadd.f32 0.0, %v1284
    %v1286 = vpop.f32.mrf.mxu0
    %1287 = vdwg.mxu0
    %v1288 = vadd.f32 %v1176, %v1285
    %v1289 = vxor.u32 %v1288, 2147483648
    %v1290 = vmul.f32 %v1289, 1.442695
    %v1291 = vpow.pop %v1290
    %v1292 = vadd.f32 %v1291, 1.0
    %v1293 = vrcp.pop %v1292
    %v1294 = vmul.f32 1.0, %v1293
    %v1295 = vtanh.pop %v1288
    %v1296 = vmul.f32 %v1294, 0.0
    %1298 = vrot.lane.b32.xlu0 %v1295, 64
    %v1299 = vpop.permute.xlu0 %1298
    %v1301 = vmul.f32 %v1294, %v1299
    %1303 = vrot.lane.b32.xlu0 %v1301, 32
    %v1304 = vpop.permute.xlu0 %1303
    %v1306 = vadd.f32 %v1296, %v1304
    %v1307 = vtanh.pop %v1306
    %1309 = vrot.lane.b32.xlu0 %v1307, 64
    %v1310 = vpop.permute.xlu0 %1309
    %v1312 = vmul.f32 %v1294, %v1310
    %1314 = vrot.lane.b32.xlu0 %v1312, 32
    %v1315 = vpop.permute.xlu0 %1314
    %v1316 = vsel %vm294, %v1315, 0
    %1318 = vmatprep.subr.mxu0 0.0
    %1319 = vmatpush1.msra.mxu0 0.0
    %1320 = vmatprep.subr.mxu0 0.0
    %1321 = vmatpush1.msra.mxu0 0.0
    %1322 = vmatprep.subr.mxu0 0.0
    %1323 = vmatpush1.msra.mxu0 0.0
    %1324 = vmatprep.subr.mxu0 0.0
    %1325 = vmatpush1.msra.mxu0 0.0
    %1326 = vmatprep.subr.mxu0 0.0
    %1327 = vmatpush1.msra.mxu0 0.0
    %1328 = vmatprep.subr.mxu0 0.0
    %1329 = vmatpush1.msra.mxu0 0.0
    %1330 = vmatprep.subr.mxu0 0.0
    %1331 = vmatpush1.msra.mxu0 0.0
    %1332 = vmatprep.subr.mxu0 0.0
    %1333 = vmatpush1.msra.mxu0 0.0
    %1334 = vmatprep.subr.mxu0 0.0
    %1335 = vmatpush1.msra.mxu0 0.0
    %1336 = vmatprep.subr.mxu0 0.0
    %1337 = vmatpush1.msra.mxu0 0.0
    %1338 = vmatprep.subr.mxu0 0.0
    %1339 = vmatpush1.msra.mxu0 0.0
    %1340 = vmatprep.subr.mxu0 0.0
    %1341 = vmatpush1.msra.mxu0 0.0
    %1342 = vmatprep.subr.mxu0 0.0
    %1343 = vmatpush1.msra.mxu0 %v1217
    %1344 = vmatprep.subr.mxu0 0.0
    %1345 = vmatpush1.msra.mxu0 %v1216
    %1346 = vmatprep.subr.mxu0 0.0
    %1347 = vmatpush1.msra.mxu0 %v1215
    %1348 = vmatprep.subr.mxu0 0.0
    %1349 = vmatpush1.msra.mxu0 %v1214
    %1350 = vmatprep.subr.mxu0 0.0
    %1351 = vmatpush2.msra.mxu0 0.0
    %1352 = vmatprep.subr.mxu0 0.0
    %1353 = vmatpush2.msra.mxu0 0.0
    %1354 = vmatprep.subr.mxu0 0.0
    %1355 = vmatpush2.msra.mxu0 0.0
    %1356 = vmatprep.subr.mxu0 0.0
    %1357 = vmatpush2.msra.mxu0 0.0
    %1358 = vmatprep.subr.mxu0 0.0
    %1359 = vmatpush2.msra.mxu0 0.0
    %1360 = vmatprep.subr.mxu0 0.0
    %1361 = vmatpush2.msra.mxu0 0.0
    %1362 = vmatprep.subr.mxu0 0.0
    %1363 = vmatpush2.msra.mxu0 0.0
    %1364 = vmatprep.subr.mxu0 0.0
    %1365 = vmatpush2.msra.mxu0 0.0
    %1366 = vmatprep.subr.mxu0 0.0
    %1367 = vmatpush2.msra.mxu0 0.0
    %1368 = vmatprep.subr.mxu0 0.0
    %1369 = vmatpush2.msra.mxu0 0.0
    %1370 = vmatprep.subr.mxu0 0.0
    %1371 = vmatpush2.msra.mxu0 0.0
    %1372 = vmatprep.subr.mxu0 0.0
    %1373 = vmatpush2.msra.mxu0 0.0
    %1374 = vmatprep.subr.mxu0 0.0
    %1375 = vmatpush2.msra.mxu0 0.0
    %1376 = vmatprep.subr.mxu0 0.0
    %1377 = vmatpush2.msra.mxu0 0.0
    %1378 = vmatprep.subr.mxu0 0.0
    %1379 = vmatpush2.msra.mxu0 0.0
    %1380 = vmatprep.subr.mxu0 0.0
    %1381 = vmatpush2.msra.mxu0 0.0
    %1382 = vmatprep.mubr.f32.mxu0 0.0
    %1383 = vmatmul.mubr.f32.gmra.mxu0 %v1316
    %v1384 = vpop.f32.mrf.mxu0
    %v1385 = vadd.f32 0.0, %v1384
    %v1386 = vpop.f32.mrf.mxu0
    %1387 = vdwg.mxu0
    %v1388 = vadd.f32 %v1181, %v1385
    %v1389 = vxor.u32 %v1388, 2147483648
    %v1390 = vmul.f32 %v1389, 1.442695
    %v1391 = vpow.pop %v1390
    %v1392 = vadd.f32 %v1391, 1.0
    %v1393 = vrcp.pop %v1392
    %v1394 = vmul.f32 1.0, %v1393
    %v1395 = vtanh.pop %v1388
    %v1396 = vmul.f32 %v1394, %v1306
    %1398 = vrot.lane.b32.xlu0 %v1395, 64
    %v1399 = vpop.permute.xlu0 %1398
    %v1401 = vmul.f32 %v1394, %v1399
    %1403 = vrot.lane.b32.xlu0 %v1401, 32
    %v1404 = vpop.permute.xlu0 %1403
    %v1406 = vadd.f32 %v1396, %v1404
    %v1407 = vtanh.pop %v1406
    %1409 = vrot.lane.b32.xlu0 %v1407, 64
    %v1410 = vpop.permute.xlu0 %1409
    %v1412 = vmul.f32 %v1394, %v1410
    %1414 = vrot.lane.b32.xlu0 %v1412, 32
    %v1415 = vpop.permute.xlu0 %1414
    %v1416 = vsel %vm294, %v1415, 0
    %1418 = vmatprep.subr.mxu0 0.0
    %1419 = vmatpush1.msra.mxu0 0.0
    %1420 = vmatprep.subr.mxu0 0.0
    %1421 = vmatpush1.msra.mxu0 0.0
    %1422 = vmatprep.subr.mxu0 0.0
    %1423 = vmatpush1.msra.mxu0 0.0
    %1424 = vmatprep.subr.mxu0 0.0
    %1425 = vmatpush1.msra.mxu0 0.0
    %1426 = vmatprep.subr.mxu0 0.0
    %1427 = vmatpush1.msra.mxu0 0.0
    %1428 = vmatprep.subr.mxu0 0.0
    %1429 = vmatpush1.msra.mxu0 0.0
    %1430 = vmatprep.subr.mxu0 0.0
    %1431 = vmatpush1.msra.mxu0 0.0
    %1432 = vmatprep.subr.mxu0 0.0
    %1433 = vmatpush1.msra.mxu0 0.0
    %1434 = vmatprep.subr.mxu0 0.0
    %1435 = vmatpush1.msra.mxu0 0.0
    %1436 = vmatprep.subr.mxu0 0.0
    %1437 = vmatpush1.msra.mxu0 0.0
    %1438 = vmatprep.subr.mxu0 0.0
    %1439 = vmatpush1.msra.mxu0 0.0
    %1440 = vmatprep.subr.mxu0 0.0
    %1441 = vmatpush1.msra.mxu0 0.0
    %1442 = vmatprep.subr.mxu0 0.0
    %1443 = vmatpush1.msra.mxu0 %v1217
    %1444 = vmatprep.subr.mxu0 0.0
    %1445 = vmatpush1.msra.mxu0 %v1216
    %1446 = vmatprep.subr.mxu0 0.0
    %1447 = vmatpush1.msra.mxu0 %v1215
    %1448 = vmatprep.subr.mxu0 0.0
    %1449 = vmatpush1.msra.mxu0 %v1214
    %1450 = vmatprep.subr.mxu0 0.0
    %1451 = vmatpush2.msra.mxu0 0.0
    %1452 = vmatprep.subr.mxu0 0.0
    %1453 = vmatpush2.msra.mxu0 0.0
    %1454 = vmatprep.subr.mxu0 0.0
    %1455 = vmatpush2.msra.mxu0 0.0
    %1456 = vmatprep.subr.mxu0 0.0
    %1457 = vmatpush2.msra.mxu0 0.0
    %1458 = vmatprep.subr.mxu0 0.0
    %1459 = vmatpush2.msra.mxu0 0.0
    %1460 = vmatprep.subr.mxu0 0.0
    %1461 = vmatpush2.msra.mxu0 0.0
    %1462 = vmatprep.subr.mxu0 0.0
    %1463 = vmatpush2.msra.mxu0 0.0
    %1464 = vmatprep.subr.mxu0 0.0
    %1465 = vmatpush2.msra.mxu0 0.0
    %1466 = vmatprep.subr.mxu0 0.0
    %1467 = vmatpush2.msra.mxu0 0.0
    %1468 = vmatprep.subr.mxu0 0.0
    %1469 = vmatpush2.msra.mxu0 0.0
    %1470 = vmatprep.subr.mxu0 0.0
    %1471 = vmatpush2.msra.mxu0 0.0
    %1472 = vmatprep.subr.mxu0 0.0
    %1473 = vmatpush2.msra.mxu0 0.0
    %1474 = vmatprep.subr.mxu0 0.0
    %1475 = vmatpush2.msra.mxu0 0.0
    %1476 = vmatprep.subr.mxu0 0.0
    %1477 = vmatpush2.msra.mxu0 0.0
    %1478 = vmatprep.subr.mxu0 0.0
    %1479 = vmatpush2.msra.mxu0 0.0
    %1480 = vmatprep.subr.mxu0 0.0
    %1481 = vmatpush2.msra.mxu0 0.0
    %1482 = vmatprep.mubr.f32.mxu0 0.0
    %1483 = vmatmul.mubr.f32.gmra.mxu0 %v1416
    %v1484 = vpop.f32.mrf.mxu0
    %v1485 = vadd.f32 0.0, %v1484
    %v1486 = vpop.f32.mrf.mxu0
    %1487 = vdwg.mxu0
    %v1488 = vadd.f32 %v1186, %v1485
    %v1489 = vxor.u32 %v1488, 2147483648
    %v1490 = vmul.f32 %v1489, 1.442695
    %v1491 = vpow.pop %v1490
    %v1492 = vadd.f32 %v1491, 1.0
    %v1493 = vrcp.pop %v1492
    %v1494 = vmul.f32 1.0, %v1493
    %v1495 = vtanh.pop %v1488
    %v1496 = vmul.f32 %v1494, %v1406
    %1498 = vrot.lane.b32.xlu0 %v1495, 64
    %v1499 = vpop.permute.xlu0 %1498
    %v1501 = vmul.f32 %v1494, %v1499
    %1503 = vrot.lane.b32.xlu0 %v1501, 32
    %v1504 = vpop.permute.xlu0 %1503
    %v1506 = vadd.f32 %v1496, %v1504
    %v1507 = vtanh.pop %v1506
    %1509 = vrot.lane.b32.xlu0 %v1507, 64
    %v1510 = vpop.permute.xlu0 %1509
    %v1512 = vmul.f32 %v1494, %v1510
    %1514 = vrot.lane.b32.xlu0 %v1512, 32
    %v1515 = vpop.permute.xlu0 %1514
    %v1516 = vsel %vm294, %v1515, 0
    %1518 = vmatprep.subr.mxu0 0.0
    %1519 = vmatpush1.msra.mxu0 0.0
    %1520 = vmatprep.subr.mxu0 0.0
    %1521 = vmatpush1.msra.mxu0 0.0
    %1522 = vmatprep.subr.mxu0 0.0
    %1523 = vmatpush1.msra.mxu0 0.0
    %1524 = vmatprep.subr.mxu0 0.0
    %1525 = vmatpush1.msra.mxu0 0.0
    %1526 = vmatprep.subr.mxu0 0.0
    %1527 = vmatpush1.msra.mxu0 0.0
    %1528 = vmatprep.subr.mxu0 0.0
    %1529 = vmatpush1.msra.mxu0 0.0
    %1530 = vmatprep.subr.mxu0 0.0
    %1531 = vmatpush1.msra.mxu0 0.0
    %1532 = vmatprep.subr.mxu0 0.0
    %1533 = vmatpush1.msra.mxu0 0.0
    %1534 = vmatprep.subr.mxu0 0.0
    %1535 = vmatpush1.msra.mxu0 0.0
    %1536 = vmatprep.subr.mxu0 0.0
    %1537 = vmatpush1.msra.mxu0 0.0
    %1538 = vmatprep.subr.mxu0 0.0
    %1539 = vmatpush1.msra.mxu0 0.0
    %1540 = vmatprep.subr.mxu0 0.0
    %1541 = vmatpush1.msra.mxu0 0.0
    %1542 = vmatprep.subr.mxu0 0.0
    %1543 = vmatpush1.msra.mxu0 %v1217
    %1544 = vmatprep.subr.mxu0 0.0
    %1545 = vmatpush1.msra.mxu0 %v1216
    %1546 = vmatprep.subr.mxu0 0.0
    %1547 = vmatpush1.msra.mxu0 %v1215
    %1548 = vmatprep.subr.mxu0 0.0
    %1549 = vmatpush1.msra.mxu0 %v1214
    %1550 = vmatprep.subr.mxu0 0.0
    %1551 = vmatpush2.msra.mxu0 0.0
    %1552 = vmatprep.subr.mxu0 0.0
    %1553 = vmatpush2.msra.mxu0 0.0
    %1554 = vmatprep.subr.mxu0 0.0
    %1555 = vmatpush2.msra.mxu0 0.0
    %1556 = vmatprep.subr.mxu0 0.0
    %1557 = vmatpush2.msra.mxu0 0.0
    %1558 = vmatprep.subr.mxu0 0.0
    %1559 = vmatpush2.msra.mxu0 0.0
    %1560 = vmatprep.subr.mxu0 0.0
    %1561 = vmatpush2.msra.mxu0 0.0
    %1562 = vmatprep.subr.mxu0 0.0
    %1563 = vmatpush2.msra.mxu0 0.0
    %1564 = vmatprep.subr.mxu0 0.0
    %1565 = vmatpush2.msra.mxu0 0.0
    %1566 = vmatprep.subr.mxu0 0.0
    %1567 = vmatpush2.msra.mxu0 0.0
    %1568 = vmatprep.subr.mxu0 0.0
    %1569 = vmatpush2.msra.mxu0 0.0
    %1570 = vmatprep.subr.mxu0 0.0
    %1571 = vmatpush2.msra.mxu0 0.0
    %1572 = vmatprep.subr.mxu0 0.0
    %1573 = vmatpush2.msra.mxu0 0.0
    %1574 = vmatprep.subr.mxu0 0.0
    %1575 = vmatpush2.msra.mxu0 0.0
    %1576 = vmatprep.subr.mxu0 0.0
    %1577 = vmatpush2.msra.mxu0 0.0
    %1578 = vmatprep.subr.mxu0 0.0
    %1579 = vmatpush2.msra.mxu0 0.0
    %1580 = vmatprep.subr.mxu0 0.0
    %1581 = vmatpush2.msra.mxu0 0.0
    %1582 = vmatprep.mubr.f32.mxu0 0.0
    %1583 = vmatmul.mubr.f32.gmra.mxu0 %v1516
    %v1584 = vpop.f32.mrf.mxu0
    %v1585 = vadd.f32 0.0, %v1584
    %v1586 = vpop.f32.mrf.mxu0
    %1587 = vdwg.mxu0
    %v1588 = vadd.f32 %v1191, %v1585
    %v1589 = vxor.u32 %v1588, 2147483648
    %v1590 = vmul.f32 %v1589, 1.442695
    %v1591 = vpow.pop %v1590
    %v1592 = vadd.f32 %v1591, 1.0
    %v1593 = vrcp.pop %v1592
    %v1594 = vmul.f32 1.0, %v1593
    %v1595 = vtanh.pop %v1588
    %v1596 = vmul.f32 %v1594, %v1506
    %1598 = vrot.lane.b32.xlu0 %v1595, 64
    %v1599 = vpop.permute.xlu0 %1598
    %v1601 = vmul.f32 %v1594, %v1599
    %1603 = vrot.lane.b32.xlu0 %v1601, 32
    %v1604 = vpop.permute.xlu0 %1603
    %v1606 = vadd.f32 %v1596, %v1604
    %v1607 = vtanh.pop %v1606
    %1609 = vrot.lane.b32.xlu0 %v1607, 64
    %v1610 = vpop.permute.xlu0 %1609
    %v1612 = vmul.f32 %v1594, %v1610
    %1614 = vrot.lane.b32.xlu0 %v1612, 32
    %v1615 = vpop.permute.xlu0 %1614
    %v1616 = vsel %vm294, %v1615, 0
    %1618 = vmatprep.subr.mxu0 0.0
    %1619 = vmatpush1.msra.mxu0 0.0
    %1620 = vmatprep.subr.mxu0 0.0
    %1621 = vmatpush1.msra.mxu0 0.0
    %1622 = vmatprep.subr.mxu0 0.0
    %1623 = vmatpush1.msra.mxu0 0.0
    %1624 = vmatprep.subr.mxu0 0.0
    %1625 = vmatpush1.msra.mxu0 0.0
    %1626 = vmatprep.subr.mxu0 0.0
    %1627 = vmatpush1.msra.mxu0 0.0
    %1628 = vmatprep.subr.mxu0 0.0
    %1629 = vmatpush1.msra.mxu0 0.0
    %1630 = vmatprep.subr.mxu0 0.0
    %1631 = vmatpush1.msra.mxu0 0.0
    %1632 = vmatprep.subr.mxu0 0.0
    %1633 = vmatpush1.msra.mxu0 0.0
    %1634 = vmatprep.subr.mxu0 0.0
    %1635 = vmatpush1.msra.mxu0 0.0
    %1636 = vmatprep.subr.mxu0 0.0
    %1637 = vmatpush1.msra.mxu0 0.0
    %1638 = vmatprep.subr.mxu0 0.0
    %1639 = vmatpush1.msra.mxu0 0.0
    %1640 = vmatprep.subr.mxu0 0.0
    %1641 = vmatpush1.msra.mxu0 0.0
    %1642 = vmatprep.subr.mxu0 0.0
    %1643 = vmatpush1.msra.mxu0 %v1217
    %1644 = vmatprep.subr.mxu0 0.0
    %1645 = vmatpush1.msra.mxu0 %v1216
    %1646 = vmatprep.subr.mxu0 0.0
    %1647 = vmatpush1.msra.mxu0 %v1215
    %1648 = vmatprep.subr.mxu0 0.0
    %1649 = vmatpush1.msra.mxu0 %v1214
    %1650 = vmatprep.subr.mxu0 0.0
    %1651 = vmatpush2.msra.mxu0 0.0
    %1652 = vmatprep.subr.mxu0 0.0
    %1653 = vmatpush2.msra.mxu0 0.0
    %1654 = vmatprep.subr.mxu0 0.0
    %1655 = vmatpush2.msra.mxu0 0.0
    %1656 = vmatprep.subr.mxu0 0.0
    %1657 = vmatpush2.msra.mxu0 0.0
    %1658 = vmatprep.subr.mxu0 0.0
    %1659 = vmatpush2.msra.mxu0 0.0
    %1660 = vmatprep.subr.mxu0 0.0
    %1661 = vmatpush2.msra.mxu0 0.0
    %1662 = vmatprep.subr.mxu0 0.0
    %1663 = vmatpush2.msra.mxu0 0.0
    %1664 = vmatprep.subr.mxu0 0.0
    %1665 = vmatpush2.msra.mxu0 0.0
    %1666 = vmatprep.subr.mxu0 0.0
    %1667 = vmatpush2.msra.mxu0 0.0
    %1668 = vmatprep.subr.mxu0 0.0
    %1669 = vmatpush2.msra.mxu0 0.0
    %1670 = vmatprep.subr.mxu0 0.0
    %1671 = vmatpush2.msra.mxu0 0.0
    %1672 = vmatprep.subr.mxu0 0.0
    %1673 = vmatpush2.msra.mxu0 0.0
    %1674 = vmatprep.subr.mxu0 0.0
    %1675 = vmatpush2.msra.mxu0 0.0
    %1676 = vmatprep.subr.mxu0 0.0
    %1677 = vmatpush2.msra.mxu0 0.0
    %1678 = vmatprep.subr.mxu0 0.0
    %1679 = vmatpush2.msra.mxu0 0.0
    %1680 = vmatprep.subr.mxu0 0.0
    %1681 = vmatpush2.msra.mxu0 0.0
    %1682 = vmatprep.mubr.f32.mxu0 0.0
    %1683 = vmatmul.mubr.f32.gmra.mxu0 %v1616
    %v1684 = vpop.f32.mrf.mxu0
    %v1685 = vadd.f32 0.0, %v1684
    %v1686 = vpop.f32.mrf.mxu0
    %1687 = vdwg.mxu0
    %v1688 = vadd.f32 %v1196, %v1685
    %v1689 = vxor.u32 %v1688, 2147483648
    %v1690 = vmul.f32 %v1689, 1.442695
    %v1691 = vpow.pop %v1690
    %v1692 = vadd.f32 %v1691, 1.0
    %v1693 = vrcp.pop %v1692
    %v1694 = vmul.f32 1.0, %v1693
    %v1695 = vtanh.pop %v1688
    %v1696 = vmul.f32 %v1694, %v1606
    %1698 = vrot.lane.b32.xlu0 %v1695, 64
    %v1699 = vpop.permute.xlu0 %1698
    %v1701 = vmul.f32 %v1694, %v1699
    %1703 = vrot.lane.b32.xlu0 %v1701, 32
    %v1704 = vpop.permute.xlu0 %1703
    %v1706 = vadd.f32 %v1696, %v1704
    %v1707 = vtanh.pop %v1706
    %1709 = vrot.lane.b32.xlu0 %v1707, 64
    %v1710 = vpop.permute.xlu0 %1709
    %v1712 = vmul.f32 %v1694, %v1710
    %1714 = vrot.lane.b32.xlu0 %v1712, 32
    %v1715 = vpop.permute.xlu0 %1714
    %v1716 = vsel %vm294, %v1715, 0
    %1718 = vmatprep.subr.mxu0 0.0
    %1719 = vmatpush1.msra.mxu0 0.0
    %1720 = vmatprep.subr.mxu0 0.0
    %1721 = vmatpush1.msra.mxu0 0.0
    %1722 = vmatprep.subr.mxu0 0.0
    %1723 = vmatpush1.msra.mxu0 0.0
    %1724 = vmatprep.subr.mxu0 0.0
    %1725 = vmatpush1.msra.mxu0 0.0
    %1726 = vmatprep.subr.mxu0 0.0
    %1727 = vmatpush1.msra.mxu0 0.0
    %1728 = vmatprep.subr.mxu0 0.0
    %1729 = vmatpush1.msra.mxu0 0.0
    %1730 = vmatprep.subr.mxu0 0.0
    %1731 = vmatpush1.msra.mxu0 0.0
    %1732 = vmatprep.subr.mxu0 0.0
    %1733 = vmatpush1.msra.mxu0 0.0
    %1734 = vmatprep.subr.mxu0 0.0
    %1735 = vmatpush1.msra.mxu0 0.0
    %1736 = vmatprep.subr.mxu0 0.0
    %1737 = vmatpush1.msra.mxu0 0.0
    %1738 = vmatprep.subr.mxu0 0.0
    %1739 = vmatpush1.msra.mxu0 0.0
    %1740 = vmatprep.subr.mxu0 0.0
    %1741 = vmatpush1.msra.mxu0 0.0
    %1742 = vmatprep.subr.mxu0 0.0
    %1743 = vmatpush1.msra.mxu0 %v1217
    %1744 = vmatprep.subr.mxu0 0.0
    %1745 = vmatpush1.msra.mxu0 %v1216
    %1746 = vmatprep.subr.mxu0 0.0
    %1747 = vmatpush1.msra.mxu0 %v1215
    %1748 = vmatprep.subr.mxu0 0.0
    %1749 = vmatpush1.msra.mxu0 %v1214
    %1750 = vmatprep.subr.mxu0 0.0
    %1751 = vmatpush2.msra.mxu0 0.0
    %1752 = vmatprep.subr.mxu0 0.0
    %1753 = vmatpush2.msra.mxu0 0.0
    %1754 = vmatprep.subr.mxu0 0.0
    %1755 = vmatpush2.msra.mxu0 0.0
    %1756 = vmatprep.subr.mxu0 0.0
    %1757 = vmatpush2.msra.mxu0 0.0
    %1758 = vmatprep.subr.mxu0 0.0
    %1759 = vmatpush2.msra.mxu0 0.0
    %1760 = vmatprep.subr.mxu0 0.0
    %1761 = vmatpush2.msra.mxu0 0.0
    %1762 = vmatprep.subr.mxu0 0.0
    %1763 = vmatpush2.msra.mxu0 0.0
    %1764 = vmatprep.subr.mxu0 0.0
    %1765 = vmatpush2.msra.mxu0 0.0
    %1766 = vmatprep.subr.mxu0 0.0
    %1767 = vmatpush2.msra.mxu0 0.0
    %1768 = vmatprep.subr.mxu0 0.0
    %1769 = vmatpush2.msra.mxu0 0.0
    %1770 = vmatprep.subr.mxu0 0.0
    %1771 = vmatpush2.msra.mxu0 0.0
    %1772 = vmatprep.subr.mxu0 0.0
    %1773 = vmatpush2.msra.mxu0 0.0
    %1774 = vmatprep.subr.mxu0 0.0
    %1775 = vmatpush2.msra.mxu0 0.0
    %1776 = vmatprep.subr.mxu0 0.0
    %1777 = vmatpush2.msra.mxu0 0.0
    %1778 = vmatprep.subr.mxu0 0.0
    %1779 = vmatpush2.msra.mxu0 0.0
    %1780 = vmatprep.subr.mxu0 0.0
    %1781 = vmatpush2.msra.mxu0 0.0
    %1782 = vmatprep.mubr.f32.mxu0 0.0
    %1783 = vmatmul.mubr.f32.gmra.mxu0 %v1716
    %v1784 = vpop.f32.mrf.mxu0
    %v1785 = vadd.f32 0.0, %v1784
    %v1786 = vpop.f32.mrf.mxu0
    %1787 = vdwg.mxu0
    %v1788 = vadd.f32 %v1201, %v1785
    %v1789 = vxor.u32 %v1788, 2147483648
    %v1790 = vmul.f32 %v1789, 1.442695
    %v1791 = vpow.pop %v1790
    %v1792 = vadd.f32 %v1791, 1.0
    %v1793 = vrcp.pop %v1792
    %v1794 = vmul.f32 1.0, %v1793
    %v1795 = vtanh.pop %v1788
    %v1796 = vmul.f32 %v1794, %v1706
    %1798 = vrot.lane.b32.xlu0 %v1795, 64
    %v1799 = vpop.permute.xlu0 %1798
    %v1801 = vmul.f32 %v1794, %v1799
    %1803 = vrot.lane.b32.xlu0 %v1801, 32
    %v1804 = vpop.permute.xlu0 %1803
    %v1806 = vadd.f32 %v1796, %v1804
    %v1807 = vtanh.pop %v1806
    %1809 = vrot.lane.b32.xlu0 %v1807, 64
    %v1810 = vpop.permute.xlu0 %1809
    %v1812 = vmul.f32 %v1794, %v1810
    %1814 = vrot.lane.b32.xlu0 %v1812, 32
    %v1815 = vpop.permute.xlu0 %1814
    %v1816 = vsel %vm294, %v1815, 0
    %1818 = vmatprep.subr.mxu0 0.0
    %1819 = vmatpush1.msra.mxu0 0.0
    %1820 = vmatprep.subr.mxu0 0.0
    %1821 = vmatpush1.msra.mxu0 0.0
    %1822 = vmatprep.subr.mxu0 0.0
    %1823 = vmatpush1.msra.mxu0 0.0
    %1824 = vmatprep.subr.mxu0 0.0
    %1825 = vmatpush1.msra.mxu0 0.0
    %1826 = vmatprep.subr.mxu0 0.0
    %1827 = vmatpush1.msra.mxu0 0.0
    %1828 = vmatprep.subr.mxu0 0.0
    %1829 = vmatpush1.msra.mxu0 0.0
    %1830 = vmatprep.subr.mxu0 0.0
    %1831 = vmatpush1.msra.mxu0 0.0
    %1832 = vmatprep.subr.mxu0 0.0
    %1833 = vmatpush1.msra.mxu0 0.0
    %1834 = vmatprep.subr.mxu0 0.0
    %1835 = vmatpush1.msra.mxu0 0.0
    %1836 = vmatprep.subr.mxu0 0.0
    %1837 = vmatpush1.msra.mxu0 0.0
    %1838 = vmatprep.subr.mxu0 0.0
    %1839 = vmatpush1.msra.mxu0 0.0
    %1840 = vmatprep.subr.mxu0 0.0
    %1841 = vmatpush1.msra.mxu0 0.0
    %1842 = vmatprep.subr.mxu0 0.0
    %1843 = vmatpush1.msra.mxu0 %v1217
    %1844 = vmatprep.subr.mxu0 0.0
    %1845 = vmatpush1.msra.mxu0 %v1216
    %1846 = vmatprep.subr.mxu0 0.0
    %1847 = vmatpush1.msra.mxu0 %v1215
    %1848 = vmatprep.subr.mxu0 0.0
    %1849 = vmatpush1.msra.mxu0 %v1214
    %1850 = vmatprep.subr.mxu0 0.0
    %1851 = vmatpush2.msra.mxu0 0.0
    %1852 = vmatprep.subr.mxu0 0.0
    %1853 = vmatpush2.msra.mxu0 0.0
    %1854 = vmatprep.subr.mxu0 0.0
    %1855 = vmatpush2.msra.mxu0 0.0
    %1856 = vmatprep.subr.mxu0 0.0
    %1857 = vmatpush2.msra.mxu0 0.0
    %1858 = vmatprep.subr.mxu0 0.0
    %1859 = vmatpush2.msra.mxu0 0.0
    %1860 = vmatprep.subr.mxu0 0.0
    %1861 = vmatpush2.msra.mxu0 0.0
    %1862 = vmatprep.subr.mxu0 0.0
    %1863 = vmatpush2.msra.mxu0 0.0
    %1864 = vmatprep.subr.mxu0 0.0
    %1865 = vmatpush2.msra.mxu0 0.0
    %1866 = vmatprep.subr.mxu0 0.0
    %1867 = vmatpush2.msra.mxu0 0.0
    %1868 = vmatprep.subr.mxu0 0.0
    %1869 = vmatpush2.msra.mxu0 0.0
    %1870 = vmatprep.subr.mxu0 0.0
    %1871 = vmatpush2.msra.mxu0 0.0
    %1872 = vmatprep.subr.mxu0 0.0
    %1873 = vmatpush2.msra.mxu0 0.0
    %1874 = vmatprep.subr.mxu0 0.0
    %1875 = vmatpush2.msra.mxu0 0.0
    %1876 = vmatprep.subr.mxu0 0.0
    %1877 = vmatpush2.msra.mxu0 0.0
    %1878 = vmatprep.subr.mxu0 0.0
    %1879 = vmatpush2.msra.mxu0 0.0
    %1880 = vmatprep.subr.mxu0 0.0
    %1881 = vmatpush2.msra.mxu0 0.0
    %1882 = vmatprep.mubr.f32.mxu0 0.0
    %1883 = vmatmul.mubr.f32.gmra.mxu0 %v1816
    %v1884 = vpop.f32.mrf.mxu0
    %v1885 = vadd.f32 0.0, %v1884
    %v1886 = vpop.f32.mrf.mxu0
    %1887 = vdwg.mxu0
    %v1888 = vadd.f32 %v1206, %v1885
    %v1889 = vxor.u32 %v1888, 2147483648
    %v1890 = vmul.f32 %v1889, 1.442695
    %v1891 = vpow.pop %v1890
    %v1892 = vadd.f32 %v1891, 1.0
    %v1893 = vrcp.pop %v1892
    %v1894 = vmul.f32 1.0, %v1893
    %v1895 = vtanh.pop %v1888
    %v1896 = vmul.f32 %v1894, %v1806
    %1898 = vrot.lane.b32.xlu0 %v1895, 64
    %v1899 = vpop.permute.xlu0 %1898
    %v1901 = vmul.f32 %v1894, %v1899
    %1903 = vrot.lane.b32.xlu0 %v1901, 32
    %v1904 = vpop.permute.xlu0 %1903
    %v1906 = vadd.f32 %v1896, %v1904
    %v1907 = vtanh.pop %v1906
    %1909 = vrot.lane.b32.xlu0 %v1907, 64
    %v1910 = vpop.permute.xlu0 %1909
    %v1912 = vmul.f32 %v1894, %v1910
    %1914 = vrot.lane.b32.xlu0 %v1912, 32
    %v1915 = vpop.permute.xlu0 %1914
    %v1916 = vsel %vm294, %v1915, 0
    %1918 = vmatprep.subr.mxu0 0.0
    %1919 = vmatpush1.msra.mxu0 0.0
    %1920 = vmatprep.subr.mxu0 0.0
    %1921 = vmatpush1.msra.mxu0 0.0
    %1922 = vmatprep.subr.mxu0 0.0
    %1923 = vmatpush1.msra.mxu0 0.0
    %1924 = vmatprep.subr.mxu0 0.0
    %1925 = vmatpush1.msra.mxu0 0.0
    %1926 = vmatprep.subr.mxu0 0.0
    %1927 = vmatpush1.msra.mxu0 0.0
    %1928 = vmatprep.subr.mxu0 0.0
    %1929 = vmatpush1.msra.mxu0 0.0
    %1930 = vmatprep.subr.mxu0 0.0
    %1931 = vmatpush1.msra.mxu0 0.0
    %1932 = vmatprep.subr.mxu0 0.0
    %1933 = vmatpush1.msra.mxu0 0.0
    %1934 = vmatprep.subr.mxu0 0.0
    %1935 = vmatpush1.msra.mxu0 0.0
    %1936 = vmatprep.subr.mxu0 0.0
    %1937 = vmatpush1.msra.mxu0 0.0
    %1938 = vmatprep.subr.mxu0 0.0
    %1939 = vmatpush1.msra.mxu0 0.0
    %1940 = vmatprep.subr.mxu0 0.0
    %1941 = vmatpush1.msra.mxu0 0.0
    %1942 = vmatprep.subr.mxu0 0.0
    %1943 = vmatpush1.msra.mxu0 %v1217
    %1944 = vmatprep.subr.mxu0 0.0
    %1945 = vmatpush1.msra.mxu0 %v1216
    %1946 = vmatprep.subr.mxu0 0.0
    %1947 = vmatpush1.msra.mxu0 %v1215
    %1948 = vmatprep.subr.mxu0 0.0
    %1949 = vmatpush1.msra.mxu0 %v1214
    %1950 = vmatprep.subr.mxu0 0.0
    %1951 = vmatpush2.msra.mxu0 0.0
    %1952 = vmatprep.subr.mxu0 0.0
    %1953 = vmatpush2.msra.mxu0 0.0
    %1954 = vmatprep.subr.mxu0 0.0
    %1955 = vmatpush2.msra.mxu0 0.0
    %1956 = vmatprep.subr.mxu0 0.0
    %1957 = vmatpush2.msra.mxu0 0.0
    %1958 = vmatprep.subr.mxu0 0.0
    %1959 = vmatpush2.msra.mxu0 0.0
    %1960 = vmatprep.subr.mxu0 0.0
    %1961 = vmatpush2.msra.mxu0 0.0
    %1962 = vmatprep.subr.mxu0 0.0
    %1963 = vmatpush2.msra.mxu0 0.0
    %1964 = vmatprep.subr.mxu0 0.0
    %1965 = vmatpush2.msra.mxu0 0.0
    %1966 = vmatprep.subr.mxu0 0.0
    %1967 = vmatpush2.msra.mxu0 0.0
    %1968 = vmatprep.subr.mxu0 0.0
    %1969 = vmatpush2.msra.mxu0 0.0
    %1970 = vmatprep.subr.mxu0 0.0
    %1971 = vmatpush2.msra.mxu0 0.0
    %1972 = vmatprep.subr.mxu0 0.0
    %1973 = vmatpush2.msra.mxu0 0.0
    %1974 = vmatprep.subr.mxu0 0.0
    %1975 = vmatpush2.msra.mxu0 0.0
    %1976 = vmatprep.subr.mxu0 0.0
    %1977 = vmatpush2.msra.mxu0 0.0
    %1978 = vmatprep.subr.mxu0 0.0
    %1979 = vmatpush2.msra.mxu0 0.0
    %1980 = vmatprep.subr.mxu0 0.0
    %1981 = vmatpush2.msra.mxu0 0.0
    %1982 = vmatprep.mubr.f32.mxu0 0.0
    %1983 = vmatmul.mubr.f32.gmra.mxu0 %v1916
    %v1984 = vpop.f32.mrf.mxu0
    %v1985 = vadd.f32 0.0, %v1984
    %v1986 = vpop.f32.mrf.mxu0
    %1987 = vdwg.mxu0
    %v1988 = vadd.f32 %v1211, %v1985
    %v1989 = vxor.u32 %v1988, 2147483648
    %v1990 = vmul.f32 %v1989, 1.442695
    %v1991 = vpow.pop %v1990
    %v1992 = vadd.f32 %v1991, 1.0
    %v1993 = vrcp.pop %v1992
    %v1994 = vmul.f32 1.0, %v1993
    %v1995 = vtanh.pop %v1988
    %v1996 = vmul.f32 %v1994, %v1906
    %1998 = vrot.lane.b32.xlu0 %v1995, 64
    %v1999 = vpop.permute.xlu0 %1998
    %v2001 = vmul.f32 %v1994, %v1999
    %2003 = vrot.lane.b32.xlu0 %v2001, 32
    %v2004 = vpop.permute.xlu0 %2003
    %v2006 = vadd.f32 %v1996, %v2004
    %v2007 = vtanh.pop %v2006
    %2009 = vrot.lane.b32.xlu0 %v2007, 64
    %v2010 = vpop.permute.xlu0 %2009
    %v2012 = vmul.f32 %v1994, %v2010
    %2014 = vrot.lane.b32.xlu0 %v2012, 32
    %v2015 = vpop.permute.xlu0 %2014
    %v2017 = vsel %vm294, %v2015, 0.0
    %2018 = vadd.xlane.f32.xlu0 %v2017
    %v2019 = vpop.xlane.xlu0 %2018
    %v2020 = vrcp.pop 32.0
    %v2021 = vmul.f32 %v2019, %v2020
    %v2022 = vsub.f32 %v2012, %v2021
    %v2023 = vmul.f32 %v2022, %v2022
    %2025 = vrot.lane.b32.xlu0 %v2023, 32
    %v2026 = vpop.permute.xlu0 %2025
    %v2028 = vsel %vm294, %v2026, 0.0
    %2029 = vadd.xlane.f32.xlu0 %v2028
    %v2030 = vpop.xlane.xlu0 %2029
    %v2031 = vmul.f32 %v2030, %v2020
    %v2032 = vadd.f32 %v2031, 1e-05
    %v2033 = vrsqrt.pop %v2032
    %v2034 = vmul.f32 %v2022, %v2033
    %v2035 = vld [vmem:[#allocation13] sm:$0x1]
    %v2036 = vlaneseq
    %v2037 = vshrl.u32 %v2036, 7
    %v2038 = vsub.s32 0, %v2037
    %v2039 = vrot.slane %v2035, %v2038
    %2041 = vrot.lane.b32.xlu0 %v2039, 96
    %v2042 = vpop.permute.xlu0 %2041
    %v2044 = vmul.f32 %v2034, %v2042
    %v2045 = vld [vmem:[#allocation14] sm:$0x1]
    %v2046 = vlaneseq
    %v2047 = vshrl.u32 %v2046, 7
    %v2048 = vsub.s32 0, %v2047
    %v2049 = vrot.slane %v2045, %v2048
    %2051 = vrot.lane.b32.xlu0 %v2049, 96
    %v2052 = vpop.permute.xlu0 %2051
    %v2054 = vadd.f32 %v2044, %v2052
    %2056 = vrot.lane.b32.xlu0 %v2054, 32
    %v2057 = vpop.permute.xlu0 %2056
    %v2059 = vsel %vm294, %v2057, 0.0
    %2060 = vadd.xlane.f32.xlu0 %v2059
    %v2061 = vpop.xlane.xlu0 %2060
    %v2062 = vmul.f32 %v2061, %v2020
    %v2063 = vsub.f32 %v2054, %v2062
    %v2064 = vmul.f32 %v2063, %v2063
    %2066 = vrot.lane.b32.xlu0 %v2064, 32
    %v2067 = vpop.permute.xlu0 %2066
    %v2069 = vsel %vm294, %v2067, 0.0
    %2070 = vadd.xlane.f32.xlu0 %v2069
    %v2071 = vpop.xlane.xlu0 %2070
    %v2072 = vmul.f32 %v2071, %v2020
    %v2073 = vadd.f32 %v2072, 1e-05
    %v2074 = vrsqrt.pop %v2073
    %v2075 = vmul.f32 %v2063, %v2074
    %v2076 = vld [vmem:[#allocation13 + $0x1] sm:$0x1]
    %v2077 = vlaneseq
    %v2078 = vshrl.u32 %v2077, 7
    %v2079 = vsub.s32 0, %v2078
    %v2080 = vrot.slane %v2076, %v2079
    %2082 = vrot.lane.b32.xlu0 %v2080, 96
    %v2083 = vpop.permute.xlu0 %2082
    %v2085 = vmul.f32 %v2075, %v2083
    %v2086 = vld [vmem:[#allocation14 + $0x1] sm:$0x1]
    %v2087 = vlaneseq
    %v2088 = vshrl.u32 %v2087, 7
    %v2089 = vsub.s32 0, %v2088
    %v2090 = vrot.slane %v2086, %v2089
    %2092 = vrot.lane.b32.xlu0 %v2090, 96
    %v2093 = vpop.permute.xlu0 %2092
    %v2095 = vadd.f32 %v2085, %v2093
    %v2096 = vld [vmem:[%s9] sm:$0xff]
    %v2097 = vld [vmem:[%s9 + $0x8] sm:$0xff]
    %v2098 = vld [vmem:[%s9 + $0x10] sm:$0xff]
    %v2099 = vld [vmem:[%s9 + $0x18] sm:$0xff]
    %v2100 = vld [vmem:[%s10] sm:$0x1]
    %v2102 = vlaneseq
    %v2103 = vshrl.u32 %v2102, 7
    %v2104 = vsub.s32 0, %v2103
    %v2105 = vrot.slane %v2100, %v2104
    %2108 = vrot.lane.b32.xlu0 %v2095, 32
    %v2109 = vpop.permute.xlu0 %2108
    %v2110 = vsel %vm294, %v2109, 0
    %2112 = vmatprep.subr.mxu0 0.0
    %2113 = vmatpush1.msra.mxu0 0.0
    %2114 = vmatprep.subr.mxu0 0.0
    %2115 = vmatpush1.msra.mxu0 0.0
    %2116 = vmatprep.subr.mxu0 0.0
    %2117 = vmatpush1.msra.mxu0 0.0
    %2118 = vmatprep.subr.mxu0 0.0
    %2119 = vmatpush1.msra.mxu0 0.0
    %2120 = vmatprep.subr.mxu0 0.0
    %2121 = vmatpush1.msra.mxu0 0.0
    %2122 = vmatprep.subr.mxu0 0.0
    %2123 = vmatpush1.msra.mxu0 0.0
    %2124 = vmatprep.subr.mxu0 0.0
    %2125 = vmatpush1.msra.mxu0 0.0
    %2126 = vmatprep.subr.mxu0 0.0
    %2127 = vmatpush1.msra.mxu0 0.0
    %2128 = vmatprep.subr.mxu0 0.0
    %2129 = vmatpush1.msra.mxu0 0.0
    %2130 = vmatprep.subr.mxu0 0.0
    %2131 = vmatpush1.msra.mxu0 0.0
    %2132 = vmatprep.subr.mxu0 0.0
    %2133 = vmatpush1.msra.mxu0 0.0
    %2134 = vmatprep.subr.mxu0 0.0
    %2135 = vmatpush1.msra.mxu0 0.0
    %2136 = vmatprep.subr.mxu0 0.0
    %2137 = vmatpush1.msra.mxu0 %v2099
    %2138 = vmatprep.subr.mxu0 0.0
    %2139 = vmatpush1.msra.mxu0 %v2098
    %2140 = vmatprep.subr.mxu0 0.0
    %2141 = vmatpush1.msra.mxu0 %v2097
    %2142 = vmatprep.subr.mxu0 0.0
    %2143 = vmatpush1.msra.mxu0 %v2096
    %2144 = vmatprep.subr.mxu0 0.0
    %2145 = vmatpush2.msra.mxu0 0.0
    %2146 = vmatprep.subr.mxu0 0.0
    %2147 = vmatpush2.msra.mxu0 0.0
    %2148 = vmatprep.subr.mxu0 0.0
    %2149 = vmatpush2.msra.mxu0 0.0
    %2150 = vmatprep.subr.mxu0 0.0
    %2151 = vmatpush2.msra.mxu0 0.0
    %2152 = vmatprep.subr.mxu0 0.0
    %2153 = vmatpush2.msra.mxu0 0.0
    %2154 = vmatprep.subr.mxu0 0.0
    %2155 = vmatpush2.msra.mxu0 0.0
    %2156 = vmatprep.subr.mxu0 0.0
    %2157 = vmatpush2.msra.mxu0 0.0
    %2158 = vmatprep.subr.mxu0 0.0
    %2159 = vmatpush2.msra.mxu0 0.0
    %2160 = vmatprep.subr.mxu0 0.0
    %2161 = vmatpush2.msra.mxu0 0.0
    %2162 = vmatprep.subr.mxu0 0.0
    %2163 = vmatpush2.msra.mxu0 0.0
    %2164 = vmatprep.subr.mxu0 0.0
    %2165 = vmatpush2.msra.mxu0 0.0
    %2166 = vmatprep.subr.mxu0 0.0
    %2167 = vmatpush2.msra.mxu0 0.0
    %2168 = vmatprep.subr.mxu0 0.0
    %2169 = vmatpush2.msra.mxu0 0.0
    %2170 = vmatprep.subr.mxu0 0.0
    %2171 = vmatpush2.msra.mxu0 0.0
    %2172 = vmatprep.subr.mxu0 0.0
    %2173 = vmatpush2.msra.mxu0 0.0
    %2174 = vmatprep.subr.mxu0 0.0
    %2175 = vmatpush2.msra.mxu0 0.0
    %2176 = vmatprep.mubr.f32.mxu0 0.0
    %2177 = vmatmul.mubr.f32.gmra.mxu0 %v2110
    %v2178 = vpop.f32.mrf.mxu0
    %v2179 = vadd.f32 %v2105, %v2178
    %v2180 = vpop.f32.mrf.mxu0
    %2181 = vdwg.mxu0
    %v2182 = vmax.f32 %v2179, 0.0
    %v2183 = vld [vmem:[%s11] sm:$0xff]
    %v2184 = vld [vmem:[%s11 + $0x8] sm:$0xff]
    %v2185 = vld [vmem:[%s12] sm:$0x1]
    %v2187 = vlaneseq
    %v2188 = vshrl.u32 %v2187, 7
    %v2189 = vsub.s32 0, %v2188
    %v2190 = vrot.slane %v2185, %v2189
    %vm2192 = vcmask 130048
    %v2194 = vsel %vm2192, %v2182, 0
    %2196 = vmatprep.subr.mxu0 0.0
    %2197 = vmatpush1.msra.mxu0 0.0
    %2198 = vmatprep.subr.mxu0 0.0
    %2199 = vmatpush1.msra.mxu0 0.0
    %2200 = vmatprep.subr.mxu0 0.0
    %2201 = vmatpush1.msra.mxu0 0.0
    %2202 = vmatprep.subr.mxu0 0.0
    %2203 = vmatpush1.msra.mxu0 0.0
    %2204 = vmatprep.subr.mxu0 0.0
    %2205 = vmatpush1.msra.mxu0 0.0
    %2206 = vmatprep.subr.mxu0 0.0
    %2207 = vmatpush1.msra.mxu0 0.0
    %2208 = vmatprep.subr.mxu0 0.0
    %2209 = vmatpush1.msra.mxu0 0.0
    %2210 = vmatprep.subr.mxu0 0.0
    %2211 = vmatpush1.msra.mxu0 0.0
    %2212 = vmatprep.subr.mxu0 0.0
    %2213 = vmatpush1.msra.mxu0 0.0
    %2214 = vmatprep.subr.mxu0 0.0
    %2215 = vmatpush1.msra.mxu0 0.0
    %2216 = vmatprep.subr.mxu0 0.0
    %2217 = vmatpush1.msra.mxu0 0.0
    %2218 = vmatprep.subr.mxu0 0.0
    %2219 = vmatpush1.msra.mxu0 0.0
    %2220 = vmatprep.subr.mxu0 0.0
    %2221 = vmatpush1.msra.mxu0 0.0
    %2222 = vmatprep.subr.mxu0 0.0
    %2223 = vmatpush1.msra.mxu0 0.0
    %2224 = vmatprep.subr.mxu0 0.0
    %2225 = vmatpush1.msra.mxu0 %v2184
    %2226 = vmatprep.subr.mxu0 0.0
    %2227 = vmatpush1.msra.mxu0 %v2183
    %2228 = vmatprep.subr.mxu0 0.0
    %2229 = vmatpush2.msra.mxu0 0.0
    %2230 = vmatprep.subr.mxu0 0.0
    %2231 = vmatpush2.msra.mxu0 0.0
    %2232 = vmatprep.subr.mxu0 0.0
    %2233 = vmatpush2.msra.mxu0 0.0
    %2234 = vmatprep.subr.mxu0 0.0
    %2235 = vmatpush2.msra.mxu0 0.0
    %2236 = vmatprep.subr.mxu0 0.0
    %2237 = vmatpush2.msra.mxu0 0.0
    %2238 = vmatprep.subr.mxu0 0.0
    %2239 = vmatpush2.msra.mxu0 0.0
    %2240 = vmatprep.subr.mxu0 0.0
    %2241 = vmatpush2.msra.mxu0 0.0
    %2242 = vmatprep.subr.mxu0 0.0
    %2243 = vmatpush2.msra.mxu0 0.0
    %2244 = vmatprep.subr.mxu0 0.0
    %2245 = vmatpush2.msra.mxu0 0.0
    %2246 = vmatprep.subr.mxu0 0.0
    %2247 = vmatpush2.msra.mxu0 0.0
    %2248 = vmatprep.subr.mxu0 0.0
    %2249 = vmatpush2.msra.mxu0 0.0
    %2250 = vmatprep.subr.mxu0 0.0
    %2251 = vmatpush2.msra.mxu0 0.0
    %2252 = vmatprep.subr.mxu0 0.0
    %2253 = vmatpush2.msra.mxu0 0.0
    %2254 = vmatprep.subr.mxu0 0.0
    %2255 = vmatpush2.msra.mxu0 0.0
    %2256 = vmatprep.subr.mxu0 0.0
    %2257 = vmatpush2.msra.mxu0 0.0
    %2258 = vmatprep.subr.mxu0 0.0
    %2259 = vmatpush2.msra.mxu0 0.0
    %2260 = vmatprep.mubr.f32.mxu0 0.0
    %2261 = vmatmul.mubr.f32.gmra.mxu0 %v2194
    %v2262 = vpop.f32.mrf.mxu0
    %v2263 = vadd.f32 %v2190, %v2262
    %v2264 = vpop.f32.mrf.mxu0
    %2265 = vdwg.mxu0
    %v2266 = vmax.f32 %v2263, 0.0
    %2267 = vst [vmem:[#allocation16] sm:$0xff] %v2266
    // Predicated region
    $region86: #{tpu_custom_call.1} parent=1 // pred_check
      _
    $region87: #{tpu_custom_call.1} parent=1 // pred_check_branch
      %2269 = sbr.rel (0) target = $region89
    $region88: #{tpu_custom_call.1} parent=1 // pred_region
      %s2271 = ssub.s32 128, 128
      %2272 = vsyncadd [#allocation4], %s2271
      %s2274 = sshll.u32 [#allocation16], 4
      %s2275 = int_to_ptr.vmem [resolvable:$true] %s2274
      %2277 = dma.vmem_to_hbm [thread:$0]  %s2275, 128, %s13, [#allocation4]
    $region89: #{tpu_custom_call.1} parent=1 // pred_fallthru
      _
    // Predicated region
    $region90: #{tpu_custom_call.1} parent=1 // pred_check
      _
    $region91: #{tpu_custom_call.1} parent=1 // pred_check_branch
      %2279 = sbr.rel (0) target = $region93
    $region92: #{tpu_custom_call.1} parent=1 // pred_region
      %2280 = dma.done [#allocation4], 128
    $region93: #{tpu_custom_call.1} parent=1 // pred_fallthru
      _
    %2281 = vsyncpa [#allocation3], 1
    %2282 = vsyncpa [#allocation6], 1
    %2283 = vsyncpa [#allocation9], 1
    %2284 = vsyncpa [#allocation12], 1
    %2285 = vsyncpa [#allocation15], 1
    %2286 = vsyncpa [#allocation4], 1

</llo_original>
